<compile_context>
chip_gen: v7x
topology: tpu7x:2x2x1
jax: 0.10.0
libtpu: 0.0.40
codegen_flags: <defaults>
</compile_context>

<pallas_src>
import functools

import jax
import jax.numpy as jnp
from jax import lax
from jax.experimental import pallas as pl
from jax.experimental.pallas import tpu as pltpu

EPS = 1e-5  # PyTorch LayerNorm default

# model dimensions (mirror MultiBiRNN defaults)
H = 32                   # hidden_size
CAT_FEATS = 2
CAT_UNIQUE = 24
ENC_DIM = 4
NUM_CLASSES = 2
IN_CH = 2 + ENC_DIM * CAT_FEATS   # 10
OUT_PAD = 128            # lane-dense padded logits width
SLAB_W = 6 * H           # 192: width of the packed small-parameter slab


# ---------------------------------------------------------------------------
# shared math (pure jnp, used inside the kernel and by the reference)
# ---------------------------------------------------------------------------
def _ln(x, gamma, beta):
    mu = jnp.mean(x, axis=-1, keepdims=True)
    var = jnp.mean((x - mu) ** 2, axis=-1, keepdims=True)
    return (x - mu) * lax.rsqrt(var + EPS) * gamma + beta


# ---------------------------------------------------------------------------
# fused Pallas kernel: fc_in -> LN -> relu -> BiGRU -> residual MLP -> fc_out
# ---------------------------------------------------------------------------
def _multibirnn_fused_kernel(seq_len, batch,
                             x_ref, w_in_ref, wih_ref, whh_ref,
                             w1_ref, w2_ref, w_out_ref, slab_ref, out_ref):
    # x_ref   : (N, IN) f32, rows in time-major (t, b) order, N = T*B
    # wih_ref : (2H, 6H) bf16  gate-packed input  weights, cols [r|z|n], each
    #           2H wide = [fwd | bwd]; rows 0:H hit fwd cols, rows H:2H bwd cols.
    # whh_ref : (2H, 6H) bf16  gate-packed hidden weights (same layout).
    # slab_ref: (12, 6H) f32   all biases / LN params, one row each.
    T, B = seq_len, batch
    H2 = whh_ref.shape[0]          # 2*hidden = 64
    Hh = H2 // 2                   # hidden   = 32
    G2 = 2 * H2                    # r|z span = 128
    f32, bf16 = jnp.float32, jnp.bfloat16

    # ---- small parameters, unpacked from the single slab (static slices) ----
    b_in, g_in, be_in = slab_ref[0:1, :Hh], slab_ref[1:2, :Hh], slab_ref[2:3, :Hh]
    gi_bias = slab_ref[3:4, :]                      # bih + [bhh_r | bhh_z | 0] folded
    bhh_n = slab_ref[4:5, :H2]
    b1, g1, be1 = slab_ref[5:6, :4 * Hh], slab_ref[6:7, :4 * Hh], slab_ref[7:8, :4 * Hh]
    b2, g2, be2 = slab_ref[8:9, :Hh], slab_ref[9:10, :Hh], slab_ref[10:11, :Hh]
    b_out = slab_ref[11:12, :out_ref.shape[1]]

    # ---- stage 1: fc_in -> LayerNorm -> relu --------------------------------
    h1 = jnp.dot(x_ref[...].astype(bf16), w_in_ref[...],
                 preferred_element_type=f32) + b_in
    h1 = jnp.maximum(_ln(h1, g_in, be_in), 0.0)                         # (N, H) f32

    # ---- stage 2: GRU input projection hoisted out of the recurrence --------
    # gi_f populates the fwd columns (bwd cols exactly 0), gi_b the bwd columns;
    # inside the loop the backward direction just indexes rows T-1-s.
    h1b = h1.astype(bf16)
    gi_f = jnp.dot(h1b, wih_ref[:Hh, :], preferred_element_type=f32) + gi_bias
    gi_b = jnp.dot(h1b, wih_ref[Hh:, :], preferred_element_type=f32)    # (N, 6H)

    whh = whh_ref[...]             # (2H, 6H) bf16, hoisted out of the loop

    def rows(a, s):                # static slice: the B rows of time step s
        return a[s * B:(s + 1) * B, :]

    # ---- stage 3: fused fwd+bwd recurrence — ONE wide matmul per step -------
    h = jnp.zeros((B, H2), f32)    # h = [h_fwd | h_bwd]
    hs = []
    for s in range(T):
        gi = rows(gi_f, s) + rows(gi_b, T - 1 - s)                      # (B, 6H)
        gh = jnp.dot(h.astype(bf16), whh, preferred_element_type=f32)   # (B, 6H)
        rz = jax.nn.sigmoid(gi[:, :G2] + gh[:, :G2])
        r, z = rz[:, :H2], rz[:, H2:]
        n = jnp.tanh(gi[:, G2:] + r * (gh[:, G2:] + bhh_n))
        h = (1.0 - z) * n + z * h
        hs.append(h)
    # TODO(synk): if T grows beyond ~8, write per-step h into a (T*B, 2H) VMEM
    # scratch (and use lax.fori_loop(unroll=True)) instead of keeping hs live.

    # re-align directions: fwd half of hs[s] is time s, bwd half is time T-1-s.
    # hs[::-1] is a Python-level reorder (free at trace time) — no flips/slice loops.
    fwd = jnp.concatenate(hs, axis=0)[:, :Hh]
    bwd = jnp.concatenate(hs[::-1], axis=0)[:, Hh:]
    gru = jnp.concatenate([fwd, bwd], axis=-1)                          # (N, 2H)

    # ---- stage 4: residual MLP tail (fc1+ln1+relu, fc2+ln2+relu, +res) ------
    r1 = jnp.dot(gru.astype(bf16), w1_ref[...], preferred_element_type=f32) + b1
    r1 = jnp.maximum(_ln(r1, g1, be1), 0.0)                             # (N, 4H)
    r2 = jnp.dot(r1.astype(bf16), w2_ref[...], preferred_element_type=f32) + b2
    r2 = jnp.maximum(_ln(r2, g2, be2), 0.0)                             # (N, H)
    h2 = r2 + h1                                                        # residual in VMEM

    # ---- stage 5: fc_out (lane-dense, padded to 128; sliced in the wrapper) -
    out_ref[...] = jnp.dot(h2.astype(bf16), w_out_ref[...],
                           preferred_element_type=f32) + b_out


_VMEM = functools.partial(pl.BlockSpec, memory_space=pltpu.MemorySpace.VMEM)


# ---------------------------------------------------------------------------
# parameters (deterministic synthetic init; mirrors MultiBiRNN.__init__ shapes)
# GRU weights are stored transposed (in, 3H) with PyTorch gate order [r, z, n].
# ---------------------------------------------------------------------------
def init_params(key):
    ks = iter(jax.random.split(key, 40))

    def dense(din, dout):
        s = float(din) ** -0.5
        w = jax.random.uniform(next(ks), (din, dout), jnp.float32, -s, s)
        b = jax.random.uniform(next(ks), (1, dout), jnp.float32, -s, s)
        return w, b

    p = {}
    p["emb0"] = 0.5 * jax.random.normal(next(ks), (CAT_UNIQUE, ENC_DIM), jnp.float32)
    p["emb1"] = 0.5 * jax.random.normal(next(ks), (CAT_UNIQUE, ENC_DIM), jnp.float32)
    p["fc_in_w"], p["fc_in_b"] = dense(IN_CH, H)
    p["ln_g"] = jnp.ones((1, H), jnp.float32)
    p["ln_b"] = jnp.zeros((1, H), jnp.float32)
    for d in ("f", "b"):  # single bidirectional GRU block
        p[f"wih_{d}"], p[f"bih_{d}"] = dense(H, 3 * H)
        p[f"whh_{d}"], p[f"bhh_{d}"] = dense(H, 3 * H)
    p["fc1_w"], p["fc1_b"] = dense(2 * H, 4 * H)
    p["ln1_g"] = jnp.ones((1, 4 * H), jnp.float32)
    p["ln1_b"] = jnp.zeros((1, 4 * H), jnp.float32)
    p["fc2_w"], p["fc2_b"] = dense(4 * H, H)
    p["ln2_g"] = jnp.ones((1, H), jnp.float32)
    p["ln2_b"] = jnp.zeros((1, H), jnp.float32)
    p["fc_out_w"], p["fc_out_b"] = dense(H, NUM_CLASSES)
    return p


def _pack_birnn(p):
    """Gate-pack the two GRU directions.

    wih_all / whh_all : (2H, 6H), columns = [ r | z | n ], each 2H = [fwd | bwd],
                        rows 0:H carry fwd weights, rows H:2H carry bwd weights
                        (per-gate block-diagonal).
    gi_bias           : (1, 6H) = bih(fwd|bwd per gate) + [bhh_r | bhh_z | 0]
                        (bhh_n is NOT folded — GRU semantics keep it inside r*()).
    bhh_n             : (1, 2H).
    """
    Hh = H

    def gsplit(a):  # (..., 3H) -> three (..., H), gate order [r, z, n]
        return a[..., :Hh], a[..., Hh:2 * Hh], a[..., 2 * Hh:]

    def blkdiag(a, b):
        z = jnp.zeros_like(a)
        return jnp.concatenate([jnp.concatenate([a, z], 1),
                                jnp.concatenate([z, b], 1)], 0)          # (2H, 2H)

    def cat_fb(f, b):
        return jnp.concatenate([f, b], axis=-1)                          # (1, 2H)

    wih_f, wih_b = gsplit(p["wih_f"]), gsplit(p["wih_b"])
    whh_f, whh_b = gsplit(p["whh_f"]), gsplit(p["whh_b"])
    bih_f, bih_b = gsplit(p["bih_f"]), gsplit(p["bih_b"])
    bhh_f, bhh_b = gsplit(p["bhh_f"]), gsplit(p["bhh_b"])

    wih_all = jnp.concatenate([blkdiag(wih_f[g], wih_b[g]) for g in range(3)], 1)
    whh_all = jnp.concatenate([blkdiag(whh_f[g], whh_b[g]) for g in range(3)], 1)

    bih_all = jnp.concatenate([cat_fb(bih_f[g], bih_b[g]) for g in range(3)], -1)
    bhh_r, bhh_z = cat_fb(bhh_f[0], bhh_b[0]), cat_fb(bhh_f[1], bhh_b[1])
    bhh_n = cat_fb(bhh_f[2], bhh_b[2])
    gi_bias = bih_all + jnp.concatenate([bhh_r, bhh_z, jnp.zeros_like(bhh_n)], -1)
    return wih_all, whh_all, gi_bias, bhh_n


# ---------------------------------------------------------------------------
# full forward: JAX glue for embedding gather, one fused Pallas call for the rest
# ---------------------------------------------------------------------------
def multibirnn_forward(p, x):
    B, T, _ = x.shape
    # TODO(synk): nn.Embedding gathers stay in plain JAX (a Pallas DMA gather is
    # not worthwhile at these sizes); matches torch concat order (emb0 on x[...,-1]).
    cont = x[..., :-CAT_FEATS]
    idx0 = x[..., -1].astype(jnp.int32)
    idx1 = x[..., -2].astype(jnp.int32)
    feats = jnp.concatenate([cont, p["emb0"][idx0], p["emb1"][idx1]], axis=-1)   # (B,T,IN)

    # time-major flattened rows (t, b) for the kernel — tiny reorder, fused by XLA
    feats_tm = jnp.transpose(feats, (1, 0, 2)).reshape(B * T, IN_CH)

    wih_all, whh_all, gi_bias, bhh_n = _pack_birnn(p)

    # lane-dense fc_out: pad weights/bias to 128 output columns (zeros elsewhere)
    w_out_pad = jnp.zeros((H, OUT_PAD), jnp.float32).at[:, :NUM_CLASSES].set(p["fc_out_w"])
    b_out_pad = jnp.zeros((1, OUT_PAD), jnp.float32).at[:, :NUM_CLASSES].set(p["fc_out_b"])

    # pack every small parameter into ONE slab -> one DMA instead of a dozen
    def row(v):
        return jnp.pad(v, ((0, 0), (0, SLAB_W - v.shape[1])))
    slab = jnp.concatenate([
        row(p["fc_in_b"]), row(p["ln_g"]), row(p["ln_b"]),
        row(gi_bias), row(bhh_n),
        row(p["fc1_b"]), row(p["ln1_g"]), row(p["ln1_b"]),
        row(p["fc2_b"]), row(p["ln2_g"]), row(p["ln2_b"]),
        row(b_out_pad),
    ], axis=0)                                                                    # (12, 192)

    bf = lambda a: a.astype(jnp.bfloat16)   # MXU operands bf16, f32 accumulate

    out_flat = pl.pallas_call(
        functools.partial(_multibirnn_fused_kernel, T, B),
        out_shape=jax.ShapeDtypeStruct((B * T, OUT_PAD), jnp.float32),
        in_specs=[_VMEM() for _ in range(8)],
        out_specs=_VMEM(),
    )(feats_tm, bf(p["fc_in_w"]), bf(wih_all), bf(whh_all),
      bf(p["fc1_w"]), bf(p["fc2_w"]), bf(w_out_pad), slab)

    return out_flat[:, :NUM_CLASSES].reshape(T, B, NUM_CLASSES).transpose(1, 0, 2)


# ---------------------------------------------------------------------------
# pure-JAX reference (same math, no Pallas) for the correctness check.
# dot_dtype selects the matmul-operand precision (bf16 matches kernel numerics).
# ---------------------------------------------------------------------------
def _dot(a, b, dt):
    return jnp.dot(a.astype(dt), b.astype(dt), preferred_element_type=jnp.float32)


def _gru_dir_ref(x_tm, wih, whh, bih, bhh, reverse, dt):
    T, B, Hh = x_tm.shape
    xs = x_tm[::-1] if reverse else x_tm

    def step(h, xt):
        gi = _dot(xt, wih, dt) + bih
        gh = _dot(h, whh, dt) + bhh
        r = jax.nn.sigmoid(gi[:, :Hh] + gh[:, :Hh])
        z = jax.nn.sigmoid(gi[:, Hh:2 * Hh] + gh[:, Hh:2 * Hh])
        n = jnp.tanh(gi[:, 2 * Hh:] + r * gh[:, 2 * Hh:])
        hn = (1.0 - z) * n + z * h
        return hn, hn

    _, hs = lax.scan(step, jnp.zeros((B, Hh), jnp.float32), xs)
    return hs[::-1] if reverse else hs


def reference_forward(p, x, dot_dtype=jnp.float32):
    B, T, _ = x.shape
    cont = x[..., :-CAT_FEATS]
    idx0 = x[..., -1].astype(jnp.int32)
    idx1 = x[..., -2].astype(jnp.int32)
    feats = jnp.concatenate([cont, p["emb0"][idx0], p["emb1"][idx1]], axis=-1)
    N = B * T
    h = jnp.maximum(_ln(_dot(feats.reshape(N, IN_CH), p["fc_in_w"], dot_dtype) + p["fc_in_b"],
                        p["ln_g"], p["ln_b"]), 0.0)
    x_tm = h.reshape(B, T, H).transpose(1, 0, 2)
    of = _gru_dir_ref(x_tm, p["wih_f"], p["whh_f"], p["bih_f"], p["bhh_f"], False, dot_dtype)
    ob = _gru_dir_ref(x_tm, p["wih_b"], p["whh_b"], p["bih_b"], p["bhh_b"], True, dot_dtype)
    gru = jnp.concatenate([of, ob], axis=-1).transpose(1, 0, 2).reshape(N, 2 * H)
    r = jnp.maximum(_ln(_dot(gru, p["fc1_w"], dot_dtype) + p["fc1_b"],
                        p["ln1_g"], p["ln1_b"]), 0.0)
    r = jnp.maximum(_ln(_dot(r, p["fc2_w"], dot_dtype) + p["fc2_b"],
                        p["ln2_g"], p["ln2_b"]), 0.0)
    h = r + h
    out = _dot(h, p["fc_out_w"], dot_dtype) + p["fc_out_b"]
    return out.reshape(B, T, NUM_CLASSES)


# ---------------------------------------------------------------------------
if __name__ == "__main__":
    key = jax.random.PRNGKey(0)
    kp, kc, ki = jax.random.split(key, 3)
    params = init_params(kp)

    B, T = 2, 8
    cont = jax.random.normal(kc, (B, T, 2), jnp.float32)
    cats = jax.random.randint(ki, (B, T, CAT_FEATS), 0, CAT_UNIQUE).astype(jnp.float32)
    x = jnp.concatenate([cont, cats], axis=-1)   # (2, 8, 4): 2 continuous + 2 categorical codes

    fwd = jax.jit(functools.partial(multibirnn_forward, params))
    out = jax.block_until_ready(fwd(x))
    assert out.shape == (B, T, NUM_CLASSES), out.shape

    # tight check vs a reference with matching bf16 matmul-operand numerics
    ref_bf16 = reference_forward(params, x, dot_dtype=jnp.bfloat16)
    err_bf16 = float(jnp.max(jnp.abs(out - ref_bf16)))
    assert jnp.allclose(out, ref_bf16, atol=5e-3, rtol=5e-3), err_bf16

    # loose sanity check vs the full-f32 reference (bf16 MXU operands shift numerics)
    ref_f32 = reference_forward(params, x, dot_dtype=jnp.float32)
    err_f32 = float(jnp.max(jnp.abs(out - ref_f32)))
    assert err_f32 < 0.25, err_f32

    print("KERNEL_OK")
</pallas_src>

<mosaic_0001>
module attributes {stable_mosaic.version = 11 : i64} {
  func.func @_multibirnn_fused_kernel(%arg0: memref<16x10xf32, #tpu.memory_space<vmem>>, %arg1: memref<10x32xbf16, #tpu.memory_space<vmem>>, %arg2: memref<64x192xbf16, #tpu.memory_space<vmem>>, %arg3: memref<64x192xbf16, #tpu.memory_space<vmem>>, %arg4: memref<64x128xbf16, #tpu.memory_space<vmem>>, %arg5: memref<128x32xbf16, #tpu.memory_space<vmem>>, %arg6: memref<32x128xbf16, #tpu.memory_space<vmem>>, %arg7: memref<12x192xf32, #tpu.memory_space<vmem>>, %arg8: memref<16x128xf32, #tpu.memory_space<vmem>>) attributes {dimension_semantics = [], scalar_prefetch = 0 : i64, scratch_operands = 0 : i64, tpu.core_type = #tpu.core_type<tc>} {
    %c0 = arith.constant 0 : index
    %c0_0 = arith.constant 0 : index
    %0 = vector.load %arg7[%c0, %c0_0] : memref<12x192xf32, #tpu.memory_space<vmem>>, vector<1x32xf32>
    %c1 = arith.constant 1 : index
    %c0_1 = arith.constant 0 : index
    %1 = vector.load %arg7[%c1, %c0_1] : memref<12x192xf32, #tpu.memory_space<vmem>>, vector<1x32xf32>
    %c2 = arith.constant 2 : index
    %c0_2 = arith.constant 0 : index
    %2 = vector.load %arg7[%c2, %c0_2] : memref<12x192xf32, #tpu.memory_space<vmem>>, vector<1x32xf32>
    %c3 = arith.constant 3 : index
    %c0_3 = arith.constant 0 : index
    %3 = vector.load %arg7[%c3, %c0_3] : memref<12x192xf32, #tpu.memory_space<vmem>>, vector<1x192xf32>
    %c4 = arith.constant 4 : index
    %c0_4 = arith.constant 0 : index
    %4 = vector.load %arg7[%c4, %c0_4] : memref<12x192xf32, #tpu.memory_space<vmem>>, vector<1x64xf32>
    %c5 = arith.constant 5 : index
    %c0_5 = arith.constant 0 : index
    %5 = vector.load %arg7[%c5, %c0_5] : memref<12x192xf32, #tpu.memory_space<vmem>>, vector<1x128xf32>
    %c6 = arith.constant 6 : index
    %c0_6 = arith.constant 0 : index
    %6 = vector.load %arg7[%c6, %c0_6] : memref<12x192xf32, #tpu.memory_space<vmem>>, vector<1x128xf32>
    %c7 = arith.constant 7 : index
    %c0_7 = arith.constant 0 : index
    %7 = vector.load %arg7[%c7, %c0_7] : memref<12x192xf32, #tpu.memory_space<vmem>>, vector<1x128xf32>
    %c8 = arith.constant 8 : index
    %c0_8 = arith.constant 0 : index
    %8 = vector.load %arg7[%c8, %c0_8] : memref<12x192xf32, #tpu.memory_space<vmem>>, vector<1x32xf32>
    %c9 = arith.constant 9 : index
    %c0_9 = arith.constant 0 : index
    %9 = vector.load %arg7[%c9, %c0_9] : memref<12x192xf32, #tpu.memory_space<vmem>>, vector<1x32xf32>
    %c10 = arith.constant 10 : index
    %c0_10 = arith.constant 0 : index
    %10 = vector.load %arg7[%c10, %c0_10] : memref<12x192xf32, #tpu.memory_space<vmem>>, vector<1x32xf32>
    %c11 = arith.constant 11 : index
    %c0_11 = arith.constant 0 : index
    %11 = vector.load %arg7[%c11, %c0_11] : memref<12x192xf32, #tpu.memory_space<vmem>>, vector<1x128xf32>
    %c0_12 = arith.constant 0 : index
    %c0_13 = arith.constant 0 : index
    %12 = vector.load %arg0[%c0_12, %c0_13] : memref<16x10xf32, #tpu.memory_space<vmem>>, vector<16x10xf32>
    %13 = arith.truncf %12 : vector<16x10xf32> to vector<16x10xbf16>
    %c0_14 = arith.constant 0 : index
    %c0_15 = arith.constant 0 : index
    %14 = vector.load %arg1[%c0_14, %c0_15] : memref<10x32xbf16, #tpu.memory_space<vmem>>, vector<10x32xbf16>
    %cst = arith.constant dense<0.000000e+00> : vector<16x32xf32>
    %15 = tpu.matmul %13, %14, %cst {dimension_numbers = #tpu.dot_dimension_numbers<[1], [0], [0], [1], [0, 0, 1, 1], [], []>} : vector<16x10xbf16>, vector<10x32xbf16>, vector<16x32xf32> -> vector<16x32xf32>
    %16 = vector.broadcast %0 : vector<1x32xf32> to vector<16x32xf32>
    %17 = arith.addf %15, %16 : vector<16x32xf32>
    %cst_16 = arith.constant dense<0.000000e+00> : vector<16xf32>
    %18 = vector.multi_reduction <add>, %17, %cst_16 [1] : vector<16x32xf32> to vector<16xf32>
    %19 = vector.shape_cast %18 : vector<16xf32> to vector<16x1xf32>
    %cst_17 = arith.constant 3.200000e+01 : f32
    %20 = vector.broadcast %cst_17 : f32 to vector<16x1xf32>
    %21 = arith.divf %19, %20 : vector<16x1xf32>
    %22 = vector.broadcast %21 : vector<16x1xf32> to vector<16x32xf32>
    %23 = arith.subf %17, %22 : vector<16x32xf32>
    %24 = arith.mulf %23, %23 : vector<16x32xf32>
    %cst_18 = arith.constant dense<0.000000e+00> : vector<16xf32>
    %25 = vector.multi_reduction <add>, %24, %cst_18 [1] : vector<16x32xf32> to vector<16xf32>
    %26 = vector.shape_cast %25 : vector<16xf32> to vector<16x1xf32>
    %cst_19 = arith.constant 3.200000e+01 : f32
    %27 = vector.broadcast %cst_19 : f32 to vector<16x1xf32>
    %28 = arith.divf %26, %27 : vector<16x1xf32>
    %29 = vector.broadcast %21 : vector<16x1xf32> to vector<16x32xf32>
    %30 = arith.subf %17, %29 : vector<16x32xf32>
    %cst_20 = arith.constant 9.99999974E-6 : f32
    %31 = vector.broadcast %cst_20 : f32 to vector<16x1xf32>
    %32 = arith.addf %28, %31 : vector<16x1xf32>
    %33 = math.rsqrt %32 : vector<16x1xf32>
    %34 = vector.broadcast %33 : vector<16x1xf32> to vector<16x32xf32>
    %35 = arith.mulf %30, %34 : vector<16x32xf32>
    %36 = vector.broadcast %1 : vector<1x32xf32> to vector<16x32xf32>
    %37 = arith.mulf %35, %36 : vector<16x32xf32>
    %38 = vector.broadcast %2 : vector<1x32xf32> to vector<16x32xf32>
    %39 = arith.addf %37, %38 : vector<16x32xf32>
    %cst_21 = arith.constant 0.000000e+00 : f32
    %40 = vector.broadcast %cst_21 : f32 to vector<16x32xf32>
    %41 = arith.maximumf %39, %40 : vector<16x32xf32>
    %42 = arith.truncf %41 : vector<16x32xf32> to vector<16x32xbf16>
    %c0_22 = arith.constant 0 : index
    %c0_23 = arith.constant 0 : index
    %43 = vector.load %arg2[%c0_22, %c0_23] : memref<64x192xbf16, #tpu.memory_space<vmem>>, vector<32x192xbf16>
    %cst_24 = arith.constant dense<0.000000e+00> : vector<16x192xf32>
    %44 = tpu.matmul %42, %43, %cst_24 {dimension_numbers = #tpu.dot_dimension_numbers<[1], [0], [0], [1], [0, 0, 1, 1], [], []>} : vector<16x32xbf16>, vector<32x192xbf16>, vector<16x192xf32> -> vector<16x192xf32>
    %45 = vector.broadcast %3 : vector<1x192xf32> to vector<16x192xf32>
    %46 = arith.addf %44, %45 : vector<16x192xf32>
    %c32 = arith.constant 32 : index
    %c0_25 = arith.constant 0 : index
    %47 = vector.load %arg2[%c32, %c0_25] : memref<64x192xbf16, #tpu.memory_space<vmem>>, vector<32x192xbf16>
    %cst_26 = arith.constant dense<0.000000e+00> : vector<16x192xf32>
    %48 = tpu.matmul %42, %47, %cst_26 {dimension_numbers = #tpu.dot_dimension_numbers<[1], [0], [0], [1], [0, 0, 1, 1], [], []>} : vector<16x32xbf16>, vector<32x192xbf16>, vector<16x192xf32> -> vector<16x192xf32>
    %c0_27 = arith.constant 0 : index
    %c0_28 = arith.constant 0 : index
    %49 = vector.load %arg3[%c0_27, %c0_28] : memref<64x192xbf16, #tpu.memory_space<vmem>>, vector<64x192xbf16>
    %cst_29 = arith.constant 0.000000e+00 : f32
    %50 = vector.broadcast %cst_29 : f32 to vector<2x64xf32>
    %51 = vector.extract_strided_slice %46 {offsets = [0, 0], sizes = [2, 192], strides = [1, 1]} : vector<16x192xf32> to vector<2x192xf32>
    %52 = vector.extract_strided_slice %48 {offsets = [14, 0], sizes = [2, 192], strides = [1, 1]} : vector<16x192xf32> to vector<2x192xf32>
    %53 = arith.addf %51, %52 : vector<2x192xf32>
    %54 = arith.truncf %50 : vector<2x64xf32> to vector<2x64xbf16>
    %cst_30 = arith.constant dense<0.000000e+00> : vector<2x192xf32>
    %55 = tpu.matmul %54, %49, %cst_30 {dimension_numbers = #tpu.dot_dimension_numbers<[1], [0], [0], [1], [0, 0, 1, 1], [], []>} : vector<2x64xbf16>, vector<64x192xbf16>, vector<2x192xf32> -> vector<2x192xf32>
    %56 = vector.extract_strided_slice %53 {offsets = [0, 0], sizes = [2, 128], strides = [1, 1]} : vector<2x192xf32> to vector<2x128xf32>
    %57 = vector.extract_strided_slice %55 {offsets = [0, 0], sizes = [2, 128], strides = [1, 1]} : vector<2x192xf32> to vector<2x128xf32>
    %58 = arith.addf %56, %57 : vector<2x128xf32>
    %59 = arith.negf %58 : vector<2x128xf32>
    %60 = math.exp %59 : vector<2x128xf32>
    %cst_31 = arith.constant 1.000000e+00 : f32
    %61 = vector.broadcast %cst_31 : f32 to vector<2x128xf32>
    %62 = arith.addf %61, %60 : vector<2x128xf32>
    %63 = arith.divf %61, %62 : vector<2x128xf32>
    %64 = vector.extract_strided_slice %63 {offsets = [0, 0], sizes = [2, 64], strides = [1, 1]} : vector<2x128xf32> to vector<2x64xf32>
    %65 = vector.extract_strided_slice %63 {offsets = [0, 64], sizes = [2, 64], strides = [1, 1]} : vector<2x128xf32> to vector<2x64xf32>
    %66 = vector.extract_strided_slice %53 {offsets = [0, 128], sizes = [2, 64], strides = [1, 1]} : vector<2x192xf32> to vector<2x64xf32>
    %67 = vector.extract_strided_slice %55 {offsets = [0, 128], sizes = [2, 64], strides = [1, 1]} : vector<2x192xf32> to vector<2x64xf32>
    %68 = vector.broadcast %4 : vector<1x64xf32> to vector<2x64xf32>
    %69 = arith.addf %67, %68 : vector<2x64xf32>
    %70 = arith.mulf %64, %69 : vector<2x64xf32>
    %71 = arith.addf %66, %70 : vector<2x64xf32>
    %72 = math.tanh %71 : vector<2x64xf32>
    %cst_32 = arith.constant 1.000000e+00 : f32
    %73 = vector.broadcast %cst_32 : f32 to vector<2x64xf32>
    %74 = arith.subf %73, %65 : vector<2x64xf32>
    %75 = arith.mulf %74, %72 : vector<2x64xf32>
    %76 = arith.mulf %65, %50 : vector<2x64xf32>
    %77 = arith.addf %75, %76 : vector<2x64xf32>
    %78 = vector.extract_strided_slice %46 {offsets = [2, 0], sizes = [2, 192], strides = [1, 1]} : vector<16x192xf32> to vector<2x192xf32>
    %79 = vector.extract_strided_slice %48 {offsets = [12, 0], sizes = [2, 192], strides = [1, 1]} : vector<16x192xf32> to vector<2x192xf32>
    %80 = arith.addf %78, %79 : vector<2x192xf32>
    %81 = arith.truncf %77 : vector<2x64xf32> to vector<2x64xbf16>
    %cst_33 = arith.constant dense<0.000000e+00> : vector<2x192xf32>
    %82 = tpu.matmul %81, %49, %cst_33 {dimension_numbers = #tpu.dot_dimension_numbers<[1], [0], [0], [1], [0, 0, 1, 1], [], []>} : vector<2x64xbf16>, vector<64x192xbf16>, vector<2x192xf32> -> vector<2x192xf32>
    %83 = vector.extract_strided_slice %80 {offsets = [0, 0], sizes = [2, 128], strides = [1, 1]} : vector<2x192xf32> to vector<2x128xf32>
    %84 = vector.extract_strided_slice %82 {offsets = [0, 0], sizes = [2, 128], strides = [1, 1]} : vector<2x192xf32> to vector<2x128xf32>
    %85 = arith.addf %83, %84 : vector<2x128xf32>
    %86 = arith.negf %85 : vector<2x128xf32>
    %87 = math.exp %86 : vector<2x128xf32>
    %cst_34 = arith.constant 1.000000e+00 : f32
    %88 = vector.broadcast %cst_34 : f32 to vector<2x128xf32>
    %89 = arith.addf %88, %87 : vector<2x128xf32>
    %90 = arith.divf %88, %89 : vector<2x128xf32>
    %91 = vector.extract_strided_slice %90 {offsets = [0, 0], sizes = [2, 64], strides = [1, 1]} : vector<2x128xf32> to vector<2x64xf32>
    %92 = vector.extract_strided_slice %90 {offsets = [0, 64], sizes = [2, 64], strides = [1, 1]} : vector<2x128xf32> to vector<2x64xf32>
    %93 = vector.extract_strided_slice %80 {offsets = [0, 128], sizes = [2, 64], strides = [1, 1]} : vector<2x192xf32> to vector<2x64xf32>
    %94 = vector.extract_strided_slice %82 {offsets = [0, 128], sizes = [2, 64], strides = [1, 1]} : vector<2x192xf32> to vector<2x64xf32>
    %95 = vector.broadcast %4 : vector<1x64xf32> to vector<2x64xf32>
    %96 = arith.addf %94, %95 : vector<2x64xf32>
    %97 = arith.mulf %91, %96 : vector<2x64xf32>
    %98 = arith.addf %93, %97 : vector<2x64xf32>
    %99 = math.tanh %98 : vector<2x64xf32>
    %cst_35 = arith.constant 1.000000e+00 : f32
    %100 = vector.broadcast %cst_35 : f32 to vector<2x64xf32>
    %101 = arith.subf %100, %92 : vector<2x64xf32>
    %102 = arith.mulf %101, %99 : vector<2x64xf32>
    %103 = arith.mulf %92, %77 : vector<2x64xf32>
    %104 = arith.addf %102, %103 : vector<2x64xf32>
    %105 = vector.extract_strided_slice %46 {offsets = [4, 0], sizes = [2, 192], strides = [1, 1]} : vector<16x192xf32> to vector<2x192xf32>
    %106 = vector.extract_strided_slice %48 {offsets = [10, 0], sizes = [2, 192], strides = [1, 1]} : vector<16x192xf32> to vector<2x192xf32>
    %107 = arith.addf %105, %106 : vector<2x192xf32>
    %108 = arith.truncf %104 : vector<2x64xf32> to vector<2x64xbf16>
    %cst_36 = arith.constant dense<0.000000e+00> : vector<2x192xf32>
    %109 = tpu.matmul %108, %49, %cst_36 {dimension_numbers = #tpu.dot_dimension_numbers<[1], [0], [0], [1], [0, 0, 1, 1], [], []>} : vector<2x64xbf16>, vector<64x192xbf16>, vector<2x192xf32> -> vector<2x192xf32>
    %110 = vector.extract_strided_slice %107 {offsets = [0, 0], sizes = [2, 128], strides = [1, 1]} : vector<2x192xf32> to vector<2x128xf32>
    %111 = vector.extract_strided_slice %109 {offsets = [0, 0], sizes = [2, 128], strides = [1, 1]} : vector<2x192xf32> to vector<2x128xf32>
    %112 = arith.addf %110, %111 : vector<2x128xf32>
    %113 = arith.negf %112 : vector<2x128xf32>
    %114 = math.exp %113 : vector<2x128xf32>
    %cst_37 = arith.constant 1.000000e+00 : f32
    %115 = vector.broadcast %cst_37 : f32 to vector<2x128xf32>
    %116 = arith.addf %115, %114 : vector<2x128xf32>
    %117 = arith.divf %115, %116 : vector<2x128xf32>
    %118 = vector.extract_strided_slice %117 {offsets = [0, 0], sizes = [2, 64], strides = [1, 1]} : vector<2x128xf32> to vector<2x64xf32>
    %119 = vector.extract_strided_slice %117 {offsets = [0, 64], sizes = [2, 64], strides = [1, 1]} : vector<2x128xf32> to vector<2x64xf32>
    %120 = vector.extract_strided_slice %107 {offsets = [0, 128], sizes = [2, 64], strides = [1, 1]} : vector<2x192xf32> to vector<2x64xf32>
    %121 = vector.extract_strided_slice %109 {offsets = [0, 128], sizes = [2, 64], strides = [1, 1]} : vector<2x192xf32> to vector<2x64xf32>
    %122 = vector.broadcast %4 : vector<1x64xf32> to vector<2x64xf32>
    %123 = arith.addf %121, %122 : vector<2x64xf32>
    %124 = arith.mulf %118, %123 : vector<2x64xf32>
    %125 = arith.addf %120, %124 : vector<2x64xf32>
    %126 = math.tanh %125 : vector<2x64xf32>
    %cst_38 = arith.constant 1.000000e+00 : f32
    %127 = vector.broadcast %cst_38 : f32 to vector<2x64xf32>
    %128 = arith.subf %127, %119 : vector<2x64xf32>
    %129 = arith.mulf %128, %126 : vector<2x64xf32>
    %130 = arith.mulf %119, %104 : vector<2x64xf32>
    %131 = arith.addf %129, %130 : vector<2x64xf32>
    %132 = vector.extract_strided_slice %46 {offsets = [6, 0], sizes = [2, 192], strides = [1, 1]} : vector<16x192xf32> to vector<2x192xf32>
    %133 = vector.extract_strided_slice %48 {offsets = [8, 0], sizes = [2, 192], strides = [1, 1]} : vector<16x192xf32> to vector<2x192xf32>
    %134 = arith.addf %132, %133 : vector<2x192xf32>
    %135 = arith.truncf %131 : vector<2x64xf32> to vector<2x64xbf16>
    %cst_39 = arith.constant dense<0.000000e+00> : vector<2x192xf32>
    %136 = tpu.matmul %135, %49, %cst_39 {dimension_numbers = #tpu.dot_dimension_numbers<[1], [0], [0], [1], [0, 0, 1, 1], [], []>} : vector<2x64xbf16>, vector<64x192xbf16>, vector<2x192xf32> -> vector<2x192xf32>
    %137 = vector.extract_strided_slice %134 {offsets = [0, 0], sizes = [2, 128], strides = [1, 1]} : vector<2x192xf32> to vector<2x128xf32>
    %138 = vector.extract_strided_slice %136 {offsets = [0, 0], sizes = [2, 128], strides = [1, 1]} : vector<2x192xf32> to vector<2x128xf32>
    %139 = arith.addf %137, %138 : vector<2x128xf32>
    %140 = arith.negf %139 : vector<2x128xf32>
    %141 = math.exp %140 : vector<2x128xf32>
    %cst_40 = arith.constant 1.000000e+00 : f32
    %142 = vector.broadcast %cst_40 : f32 to vector<2x128xf32>
    %143 = arith.addf %142, %141 : vector<2x128xf32>
    %144 = arith.divf %142, %143 : vector<2x128xf32>
    %145 = vector.extract_strided_slice %144 {offsets = [0, 0], sizes = [2, 64], strides = [1, 1]} : vector<2x128xf32> to vector<2x64xf32>
    %146 = vector.extract_strided_slice %144 {offsets = [0, 64], sizes = [2, 64], strides = [1, 1]} : vector<2x128xf32> to vector<2x64xf32>
    %147 = vector.extract_strided_slice %134 {offsets = [0, 128], sizes = [2, 64], strides = [1, 1]} : vector<2x192xf32> to vector<2x64xf32>
    %148 = vector.extract_strided_slice %136 {offsets = [0, 128], sizes = [2, 64], strides = [1, 1]} : vector<2x192xf32> to vector<2x64xf32>
    %149 = vector.broadcast %4 : vector<1x64xf32> to vector<2x64xf32>
    %150 = arith.addf %148, %149 : vector<2x64xf32>
    %151 = arith.mulf %145, %150 : vector<2x64xf32>
    %152 = arith.addf %147, %151 : vector<2x64xf32>
    %153 = math.tanh %152 : vector<2x64xf32>
    %cst_41 = arith.constant 1.000000e+00 : f32
    %154 = vector.broadcast %cst_41 : f32 to vector<2x64xf32>
    %155 = arith.subf %154, %146 : vector<2x64xf32>
    %156 = arith.mulf %155, %153 : vector<2x64xf32>
    %157 = arith.mulf %146, %131 : vector<2x64xf32>
    %158 = arith.addf %156, %157 : vector<2x64xf32>
    %159 = vector.extract_strided_slice %46 {offsets = [8, 0], sizes = [2, 192], strides = [1, 1]} : vector<16x192xf32> to vector<2x192xf32>
    %160 = vector.extract_strided_slice %48 {offsets = [6, 0], sizes = [2, 192], strides = [1, 1]} : vector<16x192xf32> to vector<2x192xf32>
    %161 = arith.addf %159, %160 : vector<2x192xf32>
    %162 = arith.truncf %158 : vector<2x64xf32> to vector<2x64xbf16>
    %cst_42 = arith.constant dense<0.000000e+00> : vector<2x192xf32>
    %163 = tpu.matmul %162, %49, %cst_42 {dimension_numbers = #tpu.dot_dimension_numbers<[1], [0], [0], [1], [0, 0, 1, 1], [], []>} : vector<2x64xbf16>, vector<64x192xbf16>, vector<2x192xf32> -> vector<2x192xf32>
    %164 = vector.extract_strided_slice %161 {offsets = [0, 0], sizes = [2, 128], strides = [1, 1]} : vector<2x192xf32> to vector<2x128xf32>
    %165 = vector.extract_strided_slice %163 {offsets = [0, 0], sizes = [2, 128], strides = [1, 1]} : vector<2x192xf32> to vector<2x128xf32>
    %166 = arith.addf %164, %165 : vector<2x128xf32>
    %167 = arith.negf %166 : vector<2x128xf32>
    %168 = math.exp %167 : vector<2x128xf32>
    %cst_43 = arith.constant 1.000000e+00 : f32
    %169 = vector.broadcast %cst_43 : f32 to vector<2x128xf32>
    %170 = arith.addf %169, %168 : vector<2x128xf32>
    %171 = arith.divf %169, %170 : vector<2x128xf32>
    %172 = vector.extract_strided_slice %171 {offsets = [0, 0], sizes = [2, 64], strides = [1, 1]} : vector<2x128xf32> to vector<2x64xf32>
    %173 = vector.extract_strided_slice %171 {offsets = [0, 64], sizes = [2, 64], strides = [1, 1]} : vector<2x128xf32> to vector<2x64xf32>
    %174 = vector.extract_strided_slice %161 {offsets = [0, 128], sizes = [2, 64], strides = [1, 1]} : vector<2x192xf32> to vector<2x64xf32>
    %175 = vector.extract_strided_slice %163 {offsets = [0, 128], sizes = [2, 64], strides = [1, 1]} : vector<2x192xf32> to vector<2x64xf32>
    %176 = vector.broadcast %4 : vector<1x64xf32> to vector<2x64xf32>
    %177 = arith.addf %175, %176 : vector<2x64xf32>
    %178 = arith.mulf %172, %177 : vector<2x64xf32>
    %179 = arith.addf %174, %178 : vector<2x64xf32>
    %180 = math.tanh %179 : vector<2x64xf32>
    %cst_44 = arith.constant 1.000000e+00 : f32
    %181 = vector.broadcast %cst_44 : f32 to vector<2x64xf32>
    %182 = arith.subf %181, %173 : vector<2x64xf32>
    %183 = arith.mulf %182, %180 : vector<2x64xf32>
    %184 = arith.mulf %173, %158 : vector<2x64xf32>
    %185 = arith.addf %183, %184 : vector<2x64xf32>
    %186 = vector.extract_strided_slice %46 {offsets = [10, 0], sizes = [2, 192], strides = [1, 1]} : vector<16x192xf32> to vector<2x192xf32>
    %187 = vector.extract_strided_slice %48 {offsets = [4, 0], sizes = [2, 192], strides = [1, 1]} : vector<16x192xf32> to vector<2x192xf32>
    %188 = arith.addf %186, %187 : vector<2x192xf32>
    %189 = arith.truncf %185 : vector<2x64xf32> to vector<2x64xbf16>
    %cst_45 = arith.constant dense<0.000000e+00> : vector<2x192xf32>
    %190 = tpu.matmul %189, %49, %cst_45 {dimension_numbers = #tpu.dot_dimension_numbers<[1], [0], [0], [1], [0, 0, 1, 1], [], []>} : vector<2x64xbf16>, vector<64x192xbf16>, vector<2x192xf32> -> vector<2x192xf32>
    %191 = vector.extract_strided_slice %188 {offsets = [0, 0], sizes = [2, 128], strides = [1, 1]} : vector<2x192xf32> to vector<2x128xf32>
    %192 = vector.extract_strided_slice %190 {offsets = [0, 0], sizes = [2, 128], strides = [1, 1]} : vector<2x192xf32> to vector<2x128xf32>
    %193 = arith.addf %191, %192 : vector<2x128xf32>
    %194 = arith.negf %193 : vector<2x128xf32>
    %195 = math.exp %194 : vector<2x128xf32>
    %cst_46 = arith.constant 1.000000e+00 : f32
    %196 = vector.broadcast %cst_46 : f32 to vector<2x128xf32>
    %197 = arith.addf %196, %195 : vector<2x128xf32>
    %198 = arith.divf %196, %197 : vector<2x128xf32>
    %199 = vector.extract_strided_slice %198 {offsets = [0, 0], sizes = [2, 64], strides = [1, 1]} : vector<2x128xf32> to vector<2x64xf32>
    %200 = vector.extract_strided_slice %198 {offsets = [0, 64], sizes = [2, 64], strides = [1, 1]} : vector<2x128xf32> to vector<2x64xf32>
    %201 = vector.extract_strided_slice %188 {offsets = [0, 128], sizes = [2, 64], strides = [1, 1]} : vector<2x192xf32> to vector<2x64xf32>
    %202 = vector.extract_strided_slice %190 {offsets = [0, 128], sizes = [2, 64], strides = [1, 1]} : vector<2x192xf32> to vector<2x64xf32>
    %203 = vector.broadcast %4 : vector<1x64xf32> to vector<2x64xf32>
    %204 = arith.addf %202, %203 : vector<2x64xf32>
    %205 = arith.mulf %199, %204 : vector<2x64xf32>
    %206 = arith.addf %201, %205 : vector<2x64xf32>
    %207 = math.tanh %206 : vector<2x64xf32>
    %cst_47 = arith.constant 1.000000e+00 : f32
    %208 = vector.broadcast %cst_47 : f32 to vector<2x64xf32>
    %209 = arith.subf %208, %200 : vector<2x64xf32>
    %210 = arith.mulf %209, %207 : vector<2x64xf32>
    %211 = arith.mulf %200, %185 : vector<2x64xf32>
    %212 = arith.addf %210, %211 : vector<2x64xf32>
    %213 = vector.extract_strided_slice %46 {offsets = [12, 0], sizes = [2, 192], strides = [1, 1]} : vector<16x192xf32> to vector<2x192xf32>
    %214 = vector.extract_strided_slice %48 {offsets = [2, 0], sizes = [2, 192], strides = [1, 1]} : vector<16x192xf32> to vector<2x192xf32>
    %215 = arith.addf %213, %214 : vector<2x192xf32>
    %216 = arith.truncf %212 : vector<2x64xf32> to vector<2x64xbf16>
    %cst_48 = arith.constant dense<0.000000e+00> : vector<2x192xf32>
    %217 = tpu.matmul %216, %49, %cst_48 {dimension_numbers = #tpu.dot_dimension_numbers<[1], [0], [0], [1], [0, 0, 1, 1], [], []>} : vector<2x64xbf16>, vector<64x192xbf16>, vector<2x192xf32> -> vector<2x192xf32>
    %218 = vector.extract_strided_slice %215 {offsets = [0, 0], sizes = [2, 128], strides = [1, 1]} : vector<2x192xf32> to vector<2x128xf32>
    %219 = vector.extract_strided_slice %217 {offsets = [0, 0], sizes = [2, 128], strides = [1, 1]} : vector<2x192xf32> to vector<2x128xf32>
    %220 = arith.addf %218, %219 : vector<2x128xf32>
    %221 = arith.negf %220 : vector<2x128xf32>
    %222 = math.exp %221 : vector<2x128xf32>
    %cst_49 = arith.constant 1.000000e+00 : f32
    %223 = vector.broadcast %cst_49 : f32 to vector<2x128xf32>
    %224 = arith.addf %223, %222 : vector<2x128xf32>
    %225 = arith.divf %223, %224 : vector<2x128xf32>
    %226 = vector.extract_strided_slice %225 {offsets = [0, 0], sizes = [2, 64], strides = [1, 1]} : vector<2x128xf32> to vector<2x64xf32>
    %227 = vector.extract_strided_slice %225 {offsets = [0, 64], sizes = [2, 64], strides = [1, 1]} : vector<2x128xf32> to vector<2x64xf32>
    %228 = vector.extract_strided_slice %215 {offsets = [0, 128], sizes = [2, 64], strides = [1, 1]} : vector<2x192xf32> to vector<2x64xf32>
    %229 = vector.extract_strided_slice %217 {offsets = [0, 128], sizes = [2, 64], strides = [1, 1]} : vector<2x192xf32> to vector<2x64xf32>
    %230 = vector.broadcast %4 : vector<1x64xf32> to vector<2x64xf32>
    %231 = arith.addf %229, %230 : vector<2x64xf32>
    %232 = arith.mulf %226, %231 : vector<2x64xf32>
    %233 = arith.addf %228, %232 : vector<2x64xf32>
    %234 = math.tanh %233 : vector<2x64xf32>
    %cst_50 = arith.constant 1.000000e+00 : f32
    %235 = vector.broadcast %cst_50 : f32 to vector<2x64xf32>
    %236 = arith.subf %235, %227 : vector<2x64xf32>
    %237 = arith.mulf %236, %234 : vector<2x64xf32>
    %238 = arith.mulf %227, %212 : vector<2x64xf32>
    %239 = arith.addf %237, %238 : vector<2x64xf32>
    %240 = vector.extract_strided_slice %46 {offsets = [14, 0], sizes = [2, 192], strides = [1, 1]} : vector<16x192xf32> to vector<2x192xf32>
    %241 = vector.extract_strided_slice %48 {offsets = [0, 0], sizes = [2, 192], strides = [1, 1]} : vector<16x192xf32> to vector<2x192xf32>
    %242 = arith.addf %240, %241 : vector<2x192xf32>
    %243 = arith.truncf %239 : vector<2x64xf32> to vector<2x64xbf16>
    %cst_51 = arith.constant dense<0.000000e+00> : vector<2x192xf32>
    %244 = tpu.matmul %243, %49, %cst_51 {dimension_numbers = #tpu.dot_dimension_numbers<[1], [0], [0], [1], [0, 0, 1, 1], [], []>} : vector<2x64xbf16>, vector<64x192xbf16>, vector<2x192xf32> -> vector<2x192xf32>
    %245 = vector.extract_strided_slice %242 {offsets = [0, 0], sizes = [2, 128], strides = [1, 1]} : vector<2x192xf32> to vector<2x128xf32>
    %246 = vector.extract_strided_slice %244 {offsets = [0, 0], sizes = [2, 128], strides = [1, 1]} : vector<2x192xf32> to vector<2x128xf32>
    %247 = arith.addf %245, %246 : vector<2x128xf32>
    %248 = arith.negf %247 : vector<2x128xf32>
    %249 = math.exp %248 : vector<2x128xf32>
    %cst_52 = arith.constant 1.000000e+00 : f32
    %250 = vector.broadcast %cst_52 : f32 to vector<2x128xf32>
    %251 = arith.addf %250, %249 : vector<2x128xf32>
    %252 = arith.divf %250, %251 : vector<2x128xf32>
    %253 = vector.extract_strided_slice %252 {offsets = [0, 0], sizes = [2, 64], strides = [1, 1]} : vector<2x128xf32> to vector<2x64xf32>
    %254 = vector.extract_strided_slice %252 {offsets = [0, 64], sizes = [2, 64], strides = [1, 1]} : vector<2x128xf32> to vector<2x64xf32>
    %255 = vector.extract_strided_slice %242 {offsets = [0, 128], sizes = [2, 64], strides = [1, 1]} : vector<2x192xf32> to vector<2x64xf32>
    %256 = vector.extract_strided_slice %244 {offsets = [0, 128], sizes = [2, 64], strides = [1, 1]} : vector<2x192xf32> to vector<2x64xf32>
    %257 = vector.broadcast %4 : vector<1x64xf32> to vector<2x64xf32>
    %258 = arith.addf %256, %257 : vector<2x64xf32>
    %259 = arith.mulf %253, %258 : vector<2x64xf32>
    %260 = arith.addf %255, %259 : vector<2x64xf32>
    %261 = math.tanh %260 : vector<2x64xf32>
    %cst_53 = arith.constant 1.000000e+00 : f32
    %262 = vector.broadcast %cst_53 : f32 to vector<2x64xf32>
    %263 = arith.subf %262, %254 : vector<2x64xf32>
    %264 = arith.mulf %263, %261 : vector<2x64xf32>
    %265 = arith.mulf %254, %239 : vector<2x64xf32>
    %266 = arith.addf %264, %265 : vector<2x64xf32>
    %267 = tpu.concatenate %77, %104, %131, %158, %185, %212, %239, %266 in 0 : vector<2x64xf32>, vector<2x64xf32>, vector<2x64xf32>, vector<2x64xf32>, vector<2x64xf32>, vector<2x64xf32>, vector<2x64xf32>, vector<2x64xf32> -> vector<16x64xf32>
    %268 = vector.extract_strided_slice %267 {offsets = [0, 0], sizes = [16, 32], strides = [1, 1]} : vector<16x64xf32> to vector<16x32xf32>
    %269 = tpu.concatenate %266, %239, %212, %185, %158, %131, %104, %77 in 0 : vector<2x64xf32>, vector<2x64xf32>, vector<2x64xf32>, vector<2x64xf32>, vector<2x64xf32>, vector<2x64xf32>, vector<2x64xf32>, vector<2x64xf32> -> vector<16x64xf32>
    %270 = vector.extract_strided_slice %269 {offsets = [0, 32], sizes = [16, 32], strides = [1, 1]} : vector<16x64xf32> to vector<16x32xf32>
    %271 = tpu.concatenate %268, %270 in 1 : vector<16x32xf32>, vector<16x32xf32> -> vector<16x64xf32>
    %272 = arith.truncf %271 : vector<16x64xf32> to vector<16x64xbf16>
    %c0_54 = arith.constant 0 : index
    %c0_55 = arith.constant 0 : index
    %273 = vector.load %arg4[%c0_54, %c0_55] : memref<64x128xbf16, #tpu.memory_space<vmem>>, vector<64x128xbf16>
    %cst_56 = arith.constant dense<0.000000e+00> : vector<16x128xf32>
    %274 = tpu.matmul %272, %273, %cst_56 {dimension_numbers = #tpu.dot_dimension_numbers<[1], [0], [0], [1], [0, 0, 1, 1], [], []>} : vector<16x64xbf16>, vector<64x128xbf16>, vector<16x128xf32> -> vector<16x128xf32>
    %275 = vector.broadcast %5 : vector<1x128xf32> to vector<16x128xf32>
    %276 = arith.addf %274, %275 : vector<16x128xf32>
    %cst_57 = arith.constant dense<0.000000e+00> : vector<16xf32>
    %277 = vector.multi_reduction <add>, %276, %cst_57 [1] : vector<16x128xf32> to vector<16xf32>
    %278 = vector.shape_cast %277 : vector<16xf32> to vector<16x1xf32>
    %cst_58 = arith.constant 1.280000e+02 : f32
    %279 = vector.broadcast %cst_58 : f32 to vector<16x1xf32>
    %280 = arith.divf %278, %279 : vector<16x1xf32>
    %281 = vector.broadcast %280 : vector<16x1xf32> to vector<16x128xf32>
    %282 = arith.subf %276, %281 : vector<16x128xf32>
    %283 = arith.mulf %282, %282 : vector<16x128xf32>
    %cst_59 = arith.constant dense<0.000000e+00> : vector<16xf32>
    %284 = vector.multi_reduction <add>, %283, %cst_59 [1] : vector<16x128xf32> to vector<16xf32>
    %285 = vector.shape_cast %284 : vector<16xf32> to vector<16x1xf32>
    %cst_60 = arith.constant 1.280000e+02 : f32
    %286 = vector.broadcast %cst_60 : f32 to vector<16x1xf32>
    %287 = arith.divf %285, %286 : vector<16x1xf32>
    %288 = vector.broadcast %280 : vector<16x1xf32> to vector<16x128xf32>
    %289 = arith.subf %276, %288 : vector<16x128xf32>
    %cst_61 = arith.constant 9.99999974E-6 : f32
    %290 = vector.broadcast %cst_61 : f32 to vector<16x1xf32>
    %291 = arith.addf %287, %290 : vector<16x1xf32>
    %292 = math.rsqrt %291 : vector<16x1xf32>
    %293 = vector.broadcast %292 : vector<16x1xf32> to vector<16x128xf32>
    %294 = arith.mulf %289, %293 : vector<16x128xf32>
    %295 = vector.broadcast %6 : vector<1x128xf32> to vector<16x128xf32>
    %296 = arith.mulf %294, %295 : vector<16x128xf32>
    %297 = vector.broadcast %7 : vector<1x128xf32> to vector<16x128xf32>
    %298 = arith.addf %296, %297 : vector<16x128xf32>
    %cst_62 = arith.constant 0.000000e+00 : f32
    %299 = vector.broadcast %cst_62 : f32 to vector<16x128xf32>
    %300 = arith.maximumf %298, %299 : vector<16x128xf32>
    %301 = arith.truncf %300 : vector<16x128xf32> to vector<16x128xbf16>
    %c0_63 = arith.constant 0 : index
    %c0_64 = arith.constant 0 : index
    %302 = vector.load %arg5[%c0_63, %c0_64] : memref<128x32xbf16, #tpu.memory_space<vmem>>, vector<128x32xbf16>
    %cst_65 = arith.constant dense<0.000000e+00> : vector<16x32xf32>
    %303 = tpu.matmul %301, %302, %cst_65 {dimension_numbers = #tpu.dot_dimension_numbers<[1], [0], [0], [1], [0, 0, 1, 1], [], []>} : vector<16x128xbf16>, vector<128x32xbf16>, vector<16x32xf32> -> vector<16x32xf32>
    %304 = vector.broadcast %8 : vector<1x32xf32> to vector<16x32xf32>
    %305 = arith.addf %303, %304 : vector<16x32xf32>
    %cst_66 = arith.constant dense<0.000000e+00> : vector<16xf32>
    %306 = vector.multi_reduction <add>, %305, %cst_66 [1] : vector<16x32xf32> to vector<16xf32>
    %307 = vector.shape_cast %306 : vector<16xf32> to vector<16x1xf32>
    %cst_67 = arith.constant 3.200000e+01 : f32
    %308 = vector.broadcast %cst_67 : f32 to vector<16x1xf32>
    %309 = arith.divf %307, %308 : vector<16x1xf32>
    %310 = vector.broadcast %309 : vector<16x1xf32> to vector<16x32xf32>
    %311 = arith.subf %305, %310 : vector<16x32xf32>
    %312 = arith.mulf %311, %311 : vector<16x32xf32>
    %cst_68 = arith.constant dense<0.000000e+00> : vector<16xf32>
    %313 = vector.multi_reduction <add>, %312, %cst_68 [1] : vector<16x32xf32> to vector<16xf32>
    %314 = vector.shape_cast %313 : vector<16xf32> to vector<16x1xf32>
    %cst_69 = arith.constant 3.200000e+01 : f32
    %315 = vector.broadcast %cst_69 : f32 to vector<16x1xf32>
    %316 = arith.divf %314, %315 : vector<16x1xf32>
    %317 = vector.broadcast %309 : vector<16x1xf32> to vector<16x32xf32>
    %318 = arith.subf %305, %317 : vector<16x32xf32>
    %cst_70 = arith.constant 9.99999974E-6 : f32
    %319 = vector.broadcast %cst_70 : f32 to vector<16x1xf32>
    %320 = arith.addf %316, %319 : vector<16x1xf32>
    %321 = math.rsqrt %320 : vector<16x1xf32>
    %322 = vector.broadcast %321 : vector<16x1xf32> to vector<16x32xf32>
    %323 = arith.mulf %318, %322 : vector<16x32xf32>
    %324 = vector.broadcast %9 : vector<1x32xf32> to vector<16x32xf32>
    %325 = arith.mulf %323, %324 : vector<16x32xf32>
    %326 = vector.broadcast %10 : vector<1x32xf32> to vector<16x32xf32>
    %327 = arith.addf %325, %326 : vector<16x32xf32>
    %cst_71 = arith.constant 0.000000e+00 : f32
    %328 = vector.broadcast %cst_71 : f32 to vector<16x32xf32>
    %329 = arith.maximumf %327, %328 : vector<16x32xf32>
    %330 = arith.addf %329, %41 : vector<16x32xf32>
    %331 = arith.truncf %330 : vector<16x32xf32> to vector<16x32xbf16>
    %c0_72 = arith.constant 0 : index
    %c0_73 = arith.constant 0 : index
    %332 = vector.load %arg6[%c0_72, %c0_73] : memref<32x128xbf16, #tpu.memory_space<vmem>>, vector<32x128xbf16>
    %cst_74 = arith.constant dense<0.000000e+00> : vector<16x128xf32>
    %333 = tpu.matmul %331, %332, %cst_74 {dimension_numbers = #tpu.dot_dimension_numbers<[1], [0], [0], [1], [0, 0, 1, 1], [], []>} : vector<16x32xbf16>, vector<32x128xbf16>, vector<16x128xf32> -> vector<16x128xf32>
    %334 = vector.broadcast %11 : vector<1x128xf32> to vector<16x128xf32>
    %335 = arith.addf %333, %334 : vector<16x128xf32>
    %c0_75 = arith.constant 0 : index
    %c0_76 = arith.constant 0 : index
    %336 = vector.load %arg8[%c0_75, %c0_76] : memref<16x128xf32, #tpu.memory_space<vmem>>, vector<16x128xf32>
    tpu.vector_store %arg8[%c0_75, %c0_76], %335 {strides = array<i32>} : memref<16x128xf32, #tpu.memory_space<vmem>>, vector<16x128xf32>,
    return
  }
}

</mosaic_0001>

<llo_original>
// kernel: multibirnn_forward.1
$region0: #{multibirnn_forward.1}
  #allocation0 [shape = 'u32[]', space=smem, size = 0x4, offset = 0x4, fixed_abs, tag = 'smem constant byte address 0x4 - core index']
  #allocation1 [shape = 'u32[144,128]{1,0:T(1,128)}', space=vmem, size = 0x12000, scoped, tag = 'internal scratch']
  %s0 = inlined_call_operand.vmem [shape: f32[16,10], index: 0, kind: input, shape index: {}]
  %s1 = inlined_call_operand.vmem [shape: bf16[10,32], index: 1, kind: input, shape index: {}]
  %s2 = inlined_call_operand.vmem [shape: bf16[64,192], index: 2, kind: input, shape index: {}]
  %s3 = inlined_call_operand.vmem [shape: bf16[64,192], index: 3, kind: input, shape index: {}]
  %s4 = inlined_call_operand.vmem [shape: bf16[64,128], index: 4, kind: input, shape index: {}]
  %s5 = inlined_call_operand.vmem [shape: bf16[128,32], index: 5, kind: input, shape index: {}]
  %s6 = inlined_call_operand.vmem [shape: bf16[32,128], index: 6, kind: input, shape index: {}]
  %s7 = inlined_call_operand.vmem [shape: f32[12,192], index: 7, kind: input, shape index: {}]
  %s8 = inlined_call_operand.vmem [shape: f32[16,128], index: 8, kind: output, shape index: {}]
  %s9 = sld [smem:[#allocation0]]
  $region42: #{multibirnn_forward.1} parent=0
    _
  %s11 = ssub.s32 1, %s9
  %s12 = scalar_select 0, %s11, %s9
  // Predicated region
  $region2: #{multibirnn_forward.1} parent=0 // pred_check
    _
  $region3: #{multibirnn_forward.1} parent=0 // pred_check_branch
    %14 = sbr.rel (0) target = $region5
  $region4: #{multibirnn_forward.1} parent=0 // pred_region
    _
  $region5: #{multibirnn_forward.1} parent=0 // pred_fallthru
    _
  // Predicated region
  $region6: #{multibirnn_forward.1} parent=0 // pred_check
    _
  $region7: #{multibirnn_forward.1} parent=0 // pred_check_branch
    %16 = sbr.rel (0) target = $region9
  $region8: #{multibirnn_forward.1} parent=0 // pred_region
    _
  $region9: #{multibirnn_forward.1} parent=0 // pred_fallthru
    _
  // Predicated region
  $region10: #{multibirnn_forward.1} parent=0 // pred_check
    _
  $region11: #{multibirnn_forward.1} parent=0 // pred_check_branch
    %18 = sbr.rel (0) target = $region13
  $region12: #{multibirnn_forward.1} parent=0 // pred_region
    _
  $region13: #{multibirnn_forward.1} parent=0 // pred_fallthru
    _
  // Predicated region
  $region14: #{multibirnn_forward.1} parent=0 // pred_check
    _
  $region15: #{multibirnn_forward.1} parent=0 // pred_check_branch
    %20 = sbr.rel (0) target = $region17
  $region16: #{multibirnn_forward.1} parent=0 // pred_region
    _
  $region17: #{multibirnn_forward.1} parent=0 // pred_fallthru
    _
  // Predicated region
  $region18: #{multibirnn_forward.1} parent=0 // pred_check
    _
  $region19: #{multibirnn_forward.1} parent=0 // pred_check_branch
    %22 = sbr.rel (0) target = $region21
  $region20: #{multibirnn_forward.1} parent=0 // pred_region
    _
  $region21: #{multibirnn_forward.1} parent=0 // pred_fallthru
    _
  // Predicated region
  $region22: #{multibirnn_forward.1} parent=0 // pred_check
    _
  $region23: #{multibirnn_forward.1} parent=0 // pred_check_branch
    %24 = sbr.rel (0) target = $region25
  $region24: #{multibirnn_forward.1} parent=0 // pred_region
    _
  $region25: #{multibirnn_forward.1} parent=0 // pred_fallthru
    _
  // Predicated region
  $region26: #{multibirnn_forward.1} parent=0 // pred_check
    _
  $region27: #{multibirnn_forward.1} parent=0 // pred_check_branch
    %26 = sbr.rel (0) target = $region29
  $region28: #{multibirnn_forward.1} parent=0 // pred_region
    _
  $region29: #{multibirnn_forward.1} parent=0 // pred_fallthru
    _
  // Predicated region
  $region30: #{multibirnn_forward.1} parent=0 // pred_check
    _
  $region31: #{multibirnn_forward.1} parent=0 // pred_check_branch
    %28 = sbr.rel (0) target = $region33
  $region32: #{multibirnn_forward.1} parent=0 // pred_region
    _
  $region33: #{multibirnn_forward.1} parent=0 // pred_fallthru
    _
  %v30 = vld [vmem:[%s7] ss:$0 sm:$0xff]
  %v31 = vld [vmem:[%s7 + $0x1] ss:$0 sm:$0xff]
  %v32 = vld [vmem:[%s7 + $0x2] ss:$0 sm:$0xff]
  %s33 = scalar_lea.vmem %s7, 3
  %v34 = vld [vmem:[%s33] ss:$8 sm:$0x3]
  %v35 = vld [vmem:[%s7 + $0x4] ss:$0 sm:$0xff]
  %v36 = vld [vmem:[%s7 + $0x5] ss:$0 sm:$0xff]
  %v37 = vld [vmem:[%s7 + $0x6] ss:$0 sm:$0xff]
  %v38 = vld [vmem:[%s7 + $0x7] ss:$0 sm:$0xff]
  %v39 = vld [vmem:[%s7 + $0x10] ss:$0 sm:$0xff]
  %v40 = vld [vmem:[%s7 + $0x11] ss:$0 sm:$0xff]
  %v41 = vld [vmem:[%s7 + $0x12] ss:$0 sm:$0xff]
  %v42 = vld [vmem:[%s7 + $0x13] ss:$0 sm:$0xff]
  %v43 = vld [vmem:[%s0] sm:$0xff]
  %v44 = vld [vmem:[%s0 + $0x8] sm:$0xff]
  %v45 = vpack.c.bf16 %v44, %v43
  %v46 = vld [vmem:[%s1] sm:$0xf]
  %v47 = vld [vmem:[%s1 + $0x4] sm:$0x1]
  %v50 = vunpack.c.l.b16 %v46
  %v51 = vunpack.c.l.b16 %v47
  %v52 = vpack.c.b16 %v51, %v50
  %vm53 = vcmask 80896
  %v55 = vsel %vm53, %v45, 0
  %vm57 = vcmask 1044480
  %v59 = vsel %vm57, %v52, 0
  %61 = vmatprep.subr.bf16.mxu0 0
  %62 = vmatpush1.bf16.msra.mxu0 %v59
  %63 = vmatprep.subr.bf16.mxu0 0
  %64 = vmatpush1.bf16.msra.mxu0 0
  %65 = vmatprep.subr.bf16.mxu0 0
  %66 = vmatpush1.bf16.msra.mxu0 0
  %67 = vmatprep.subr.bf16.mxu0 0
  %68 = vmatpush1.bf16.msra.mxu0 0
  %69 = vmatprep.subr.bf16.mxu0 0
  %70 = vmatpush1.bf16.msra.mxu0 0
  %71 = vmatprep.subr.bf16.mxu0 0
  %72 = vmatpush1.bf16.msra.mxu0 0
  %73 = vmatprep.subr.bf16.mxu0 0
  %74 = vmatpush1.bf16.msra.mxu0 0
  %75 = vmatprep.subr.bf16.mxu0 0
  %76 = vmatpush1.bf16.msra.mxu0 0
  %77 = vmatprep.subr.bf16.mxu0 0
  %78 = vmatpush1.bf16.msra.mxu0 0
  %79 = vmatprep.subr.bf16.mxu0 0
  %80 = vmatpush1.bf16.msra.mxu0 0
  %81 = vmatprep.subr.bf16.mxu0 0
  %82 = vmatpush1.bf16.msra.mxu0 0
  %83 = vmatprep.subr.bf16.mxu0 0
  %84 = vmatpush1.bf16.msra.mxu0 0
  %85 = vmatprep.subr.bf16.mxu0 0
  %86 = vmatpush1.bf16.msra.mxu0 0
  %87 = vmatprep.subr.bf16.mxu0 0
  %88 = vmatpush1.bf16.msra.mxu0 0
  %89 = vmatprep.subr.bf16.mxu0 0
  %90 = vmatpush1.bf16.msra.mxu0 0
  %91 = vmatprep.subr.bf16.mxu0 0
  %92 = vmatpush1.bf16.msra.mxu0 0
  %93 = vmatprep.mubr.bf16.mxu0 0
  %94 = vmatmul.mubr.bf16.gmra.mrb[0].mxu0 %v55
  %v95 = vpop.f32.mrb[0].mxu0
  %v96 = vadd.f32 %v30, %v95
  %v97 = vpop.f32.mrb[0].mxu0
  %v98 = vpop.f32.mrb[0].mxu0
  %v99 = vadd.f32 %v30, %v98
  %v100 = vpop.f32.mrb[0].mxu0
  %101 = vdwg.mxu0
  %vm102 = vcmask 261120
  %v103 = vsel %vm102, %v96, 0.0
  %104 = vadd.xlane.f32.xlu0 %v103
  %v105 = vpop.xlane.xlu0 %104
  %v106 = vsel %vm102, %v99, 0.0
  %107 = vadd.xlane.f32.xlu0 %v106
  %v108 = vpop.xlane.xlu0 %107
  %v109 = vrcp.pop 32.0
  %v110 = vmul.f32 %v105, %v109
  %v111 = vmul.f32 %v108, %v109
  %v112 = vsub.f32 %v96, %v110
  %v113 = vsub.f32 %v99, %v111
  %v114 = vmul.f32 %v112, %v112
  %v115 = vmul.f32 %v113, %v113
  %v116 = vsel %vm102, %v114, 0.0
  %117 = vadd.xlane.f32.xlu0 %v116
  %v118 = vpop.xlane.xlu0 %117
  %v119 = vsel %vm102, %v115, 0.0
  %120 = vadd.xlane.f32.xlu0 %v119
  %v121 = vpop.xlane.xlu0 %120
  %v122 = vmul.f32 %v118, %v109
  %v123 = vmul.f32 %v121, %v109
  %v124 = vadd.f32 %v122, 1e-05
  %v125 = vadd.f32 %v123, 1e-05
  %v126 = vrsqrt.pop %v124
  %v127 = vrsqrt.pop %v125
  %v128 = vmul.f32 %v112, %v126
  %v129 = vmul.f32 %v113, %v127
  %v130 = vmul.f32 %v128, %v31
  %v131 = vmul.f32 %v129, %v31
  %v132 = vadd.f32 %v130, %v32
  %v133 = vadd.f32 %v131, %v32
  %v134 = vmax.f32 %v132, 0.0
  %v135 = vmax.f32 %v133, 0.0
  %v136 = vpack.c.bf16 %v135, %v134
  %v137 = vld [vmem:[%s2] sm:$0xff]
  %v138 = vld [vmem:[%s2 + $0x8] sm:$0xff]
  %v139 = vld [vmem:[%s2 + $0x10] sm:$0xff]
  %v140 = vld [vmem:[%s2 + $0x18] sm:$0xff]
  %v142 = vlaneseq
  %v143 = vshrl.u32 %v142, 7
  %v144 = vsub.s32 0, %v143
  %v145 = vrot.slane %v34, %v144
  %v146 = vlaneseq
  %v147 = vshrl.u32 %v146, 7
  %v148 = vsub.s32 1, %v147
  %v149 = vrot.slane %v34, %v148
  %v156 = vunpack.c.l.b16 %v137
  %v157 = vunpack.c.h.b16 %v137
  %v158 = vunpack.c.l.b16 %v138
  %v159 = vunpack.c.h.b16 %v138
  %v160 = vunpack.c.l.b16 %v139
  %v161 = vunpack.c.h.b16 %v139
  %v162 = vunpack.c.l.b16 %v140
  %v163 = vunpack.c.h.b16 %v140
  %v164 = vpack.c.b16 %v158, %v156
  %v165 = vpack.c.b16 %v159, %v157
  %v166 = vpack.c.b16 %v162, %v160
  %v167 = vpack.c.b16 %v163, %v161
  %v173 = vsel %vm102, %v136, 0
  %175 = vmatprep.subr.bf16.mxu0 %v165
  %176 = vmatpush1.bf16.msra.mxu0 %v164
  %177 = vmatprep.subr.bf16.mxu0 %v167
  %178 = vmatpush1.bf16.msra.mxu0 %v166
  %179 = vmatprep.subr.bf16.mxu0 0
  %180 = vmatpush1.bf16.msra.mxu0 0
  %181 = vmatprep.subr.bf16.mxu0 0
  %182 = vmatpush1.bf16.msra.mxu0 0
  %183 = vmatprep.subr.bf16.mxu0 0
  %184 = vmatpush1.bf16.msra.mxu0 0
  %185 = vmatprep.subr.bf16.mxu0 0
  %186 = vmatpush1.bf16.msra.mxu0 0
  %187 = vmatprep.subr.bf16.mxu0 0
  %188 = vmatpush1.bf16.msra.mxu0 0
  %189 = vmatprep.subr.bf16.mxu0 0
  %190 = vmatpush1.bf16.msra.mxu0 0
  %191 = vmatprep.subr.bf16.mxu0 0
  %192 = vmatpush1.bf16.msra.mxu0 0
  %193 = vmatprep.subr.bf16.mxu0 0
  %194 = vmatpush1.bf16.msra.mxu0 0
  %195 = vmatprep.subr.bf16.mxu0 0
  %196 = vmatpush1.bf16.msra.mxu0 0
  %197 = vmatprep.subr.bf16.mxu0 0
  %198 = vmatpush1.bf16.msra.mxu0 0
  %199 = vmatprep.subr.bf16.mxu0 0
  %200 = vmatpush1.bf16.msra.mxu0 0
  %201 = vmatprep.subr.bf16.mxu0 0
  %202 = vmatpush1.bf16.msra.mxu0 0
  %203 = vmatprep.subr.bf16.mxu0 0
  %204 = vmatpush1.bf16.msra.mxu0 0
  %205 = vmatprep.subr.bf16.mxu0 0
  %206 = vmatpush1.bf16.msra.mxu0 0
  %207 = vmatprep.mubr.bf16.mxu0 0
  %208 = vmatmul.mubr.bf16.gmra.mrb[0].mxu0 %v173
  %v209 = vpop.f32.mrb[0].mxu0
  %v210 = vadd.f32 %v145, %v209
  %v211 = vpop.f32.mrb[0].mxu0
  %v212 = vadd.f32 %v149, %v211
  %v213 = vpop.f32.mrb[0].mxu0
  %v214 = vadd.f32 %v145, %v213
  %v215 = vpop.f32.mrb[0].mxu0
  %v216 = vadd.f32 %v149, %v215
  %217 = vdwg.mxu0
  %v218 = vld [vmem:[%s2 + $0x20] sm:$0xff]
  %v219 = vld [vmem:[%s2 + $0x28] sm:$0xff]
  %v220 = vld [vmem:[%s2 + $0x30] sm:$0xff]
  %v221 = vld [vmem:[%s2 + $0x38] sm:$0xff]
  %v226 = vunpack.c.l.b16 %v218
  %v227 = vunpack.c.h.b16 %v218
  %v228 = vunpack.c.l.b16 %v219
  %v229 = vunpack.c.h.b16 %v219
  %v230 = vunpack.c.l.b16 %v220
  %v231 = vunpack.c.h.b16 %v220
  %v232 = vunpack.c.l.b16 %v221
  %v233 = vunpack.c.h.b16 %v221
  %v234 = vpack.c.b16 %v228, %v226
  %v235 = vpack.c.b16 %v229, %v227
  %v236 = vpack.c.b16 %v232, %v230
  %v237 = vpack.c.b16 %v233, %v231
  %242 = vmatprep.subr.bf16.mxu0 %v235
  %243 = vmatpush1.bf16.msra.mxu0 %v234
  %244 = vmatprep.subr.bf16.mxu0 %v237
  %245 = vmatpush1.bf16.msra.mxu0 %v236
  %246 = vmatprep.subr.bf16.mxu0 0
  %247 = vmatpush1.bf16.msra.mxu0 0
  %248 = vmatprep.subr.bf16.mxu0 0
  %249 = vmatpush1.bf16.msra.mxu0 0
  %250 = vmatprep.subr.bf16.mxu0 0
  %251 = vmatpush1.bf16.msra.mxu0 0
  %252 = vmatprep.subr.bf16.mxu0 0
  %253 = vmatpush1.bf16.msra.mxu0 0
  %254 = vmatprep.subr.bf16.mxu0 0
  %255 = vmatpush1.bf16.msra.mxu0 0
  %256 = vmatprep.subr.bf16.mxu0 0
  %257 = vmatpush1.bf16.msra.mxu0 0
  %258 = vmatprep.subr.bf16.mxu0 0
  %259 = vmatpush1.bf16.msra.mxu0 0
  %260 = vmatprep.subr.bf16.mxu0 0
  %261 = vmatpush1.bf16.msra.mxu0 0
  %262 = vmatprep.subr.bf16.mxu0 0
  %263 = vmatpush1.bf16.msra.mxu0 0
  %264 = vmatprep.subr.bf16.mxu0 0
  %265 = vmatpush1.bf16.msra.mxu0 0
  %266 = vmatprep.subr.bf16.mxu0 0
  %267 = vmatpush1.bf16.msra.mxu0 0
  %268 = vmatprep.subr.bf16.mxu0 0
  %269 = vmatpush1.bf16.msra.mxu0 0
  %270 = vmatprep.subr.bf16.mxu0 0
  %271 = vmatpush1.bf16.msra.mxu0 0
  %272 = vmatprep.subr.bf16.mxu0 0
  %273 = vmatpush1.bf16.msra.mxu0 0
  %274 = vmatprep.mubr.bf16.mxu0 0
  %275 = vmatmul.mubr.bf16.gmra.mrb[0].mxu0 %v173
  %v276 = vpop.f32.mrb[0].mxu0
  %v277 = vadd.f32 0.0, %v276
  %v278 = vpop.f32.mrb[0].mxu0
  %v279 = vadd.f32 0.0, %v278
  %v280 = vpop.f32.mrb[0].mxu0
  %v281 = vadd.f32 0.0, %v280
  %v282 = vpop.f32.mrb[0].mxu0
  %v283 = vadd.f32 0.0, %v282
  %284 = vdwg.mxu0
  %v285 = vld [vmem:[%s3] sm:$0xff]
  %v286 = vld [vmem:[%s3 + $0x8] sm:$0xff]
  %v287 = vld [vmem:[%s3 + $0x10] sm:$0xff]
  %v288 = vld [vmem:[%s3 + $0x18] sm:$0xff]
  %v289 = vld [vmem:[%s3 + $0x20] sm:$0xff]
  %v290 = vld [vmem:[%s3 + $0x28] sm:$0xff]
  %v291 = vld [vmem:[%s3 + $0x30] sm:$0xff]
  %v292 = vld [vmem:[%s3 + $0x38] sm:$0xff]
  %v295 = vrot.slane %v281, 6
  %v296 = vrot.slane %v283, 6
  %v299 = vadd.f32 %v210, %v295
  %v300 = vadd.f32 %v212, %v296
  %v309 = vunpack.c.l.b16 %v285
  %v310 = vunpack.c.h.b16 %v285
  %v311 = vunpack.c.l.b16 %v286
  %v312 = vunpack.c.h.b16 %v286
  %v313 = vunpack.c.l.b16 %v287
  %v314 = vunpack.c.h.b16 %v287
  %v315 = vunpack.c.l.b16 %v288
  %v316 = vunpack.c.h.b16 %v288
  %v317 = vunpack.c.l.b16 %v289
  %v318 = vunpack.c.h.b16 %v289
  %v319 = vunpack.c.l.b16 %v290
  %v320 = vunpack.c.h.b16 %v290
  %v321 = vunpack.c.l.b16 %v291
  %v322 = vunpack.c.h.b16 %v291
  %v323 = vunpack.c.l.b16 %v292
  %v324 = vunpack.c.h.b16 %v292
  %v325 = vpack.c.b16 %v311, %v309
  %v326 = vpack.c.b16 %v312, %v310
  %v327 = vpack.c.b16 %v315, %v313
  %v328 = vpack.c.b16 %v316, %v314
  %v329 = vpack.c.b16 %v319, %v317
  %v330 = vpack.c.b16 %v320, %v318
  %v331 = vpack.c.b16 %v323, %v321
  %v332 = vpack.c.b16 %v324, %v322
  %vm341 = vcmask 523264
  %v343 = vsel %vm341, 0, 0
  %345 = vmatprep.subr.bf16.mxu0 %v326
  %346 = vmatpush1.bf16.msra.mxu0 %v325
  %347 = vmatprep.subr.bf16.mxu0 %v328
  %348 = vmatpush1.bf16.msra.mxu0 %v327
  %349 = vmatprep.subr.bf16.mxu0 %v330
  %350 = vmatpush1.bf16.msra.mxu0 %v329
  %351 = vmatprep.subr.bf16.mxu0 %v332
  %352 = vmatpush1.bf16.msra.mxu0 %v331
  %353 = vmatprep.subr.bf16.mxu0 0
  %354 = vmatpush1.bf16.msra.mxu0 0
  %355 = vmatprep.subr.bf16.mxu0 0
  %356 = vmatpush1.bf16.msra.mxu0 0
  %357 = vmatprep.subr.bf16.mxu0 0
  %358 = vmatpush1.bf16.msra.mxu0 0
  %359 = vmatprep.subr.bf16.mxu0 0
  %360 = vmatpush1.bf16.msra.mxu0 0
  %361 = vmatprep.subr.bf16.mxu0 0
  %362 = vmatpush1.bf16.msra.mxu0 0
  %363 = vmatprep.subr.bf16.mxu0 0
  %364 = vmatpush1.bf16.msra.mxu0 0
  %365 = vmatprep.subr.bf16.mxu0 0
  %366 = vmatpush1.bf16.msra.mxu0 0
  %367 = vmatprep.subr.bf16.mxu0 0
  %368 = vmatpush1.bf16.msra.mxu0 0
  %369 = vmatprep.subr.bf16.mxu0 0
  %370 = vmatpush1.bf16.msra.mxu0 0
  %371 = vmatprep.subr.bf16.mxu0 0
  %372 = vmatpush1.bf16.msra.mxu0 0
  %373 = vmatprep.subr.bf16.mxu0 0
  %374 = vmatpush1.bf16.msra.mxu0 0
  %375 = vmatprep.subr.bf16.mxu0 0
  %376 = vmatpush1.bf16.msra.mxu0 0
  %377 = vmatprep.mubr.bf16.mxu0 0
  %378 = vmatmul.mubr.bf16.gmra.mrb[0].mxu0 %v343
  %v379 = vpop.f32.mrb[0].mxu0
  %v380 = vadd.f32 0.0, %v379
  %v381 = vpop.f32.mrb[0].mxu0
  %v382 = vadd.f32 0.0, %v381
  %v383 = vpop.f32.mrb[0].mxu0
  %v384 = vpop.f32.mrb[0].mxu0
  %385 = vdwg.mxu0
  %v386 = vadd.f32 %v299, %v380
  %v387 = vxor.u32 %v386, 2147483648
  %v388 = vmul.f32 %v387, 1.442695
  %v389 = vpow.pop %v388
  %v390 = vadd.f32 %v389, 1.0
  %v391 = vrcp.pop %v390
  %v392 = vmul.f32 1.0, %v391
  %v393 = vadd.f32 %v382, %v35
  %v394 = vmul.f32 %v392, %v393
  %v395 = vadd.f32 %v300, %v394
  %v396 = vtanh.pop %v395
  %v397 = vsub.f32 1.0, %v392
  %399 = vrot.lane.b32.xlu0 %v396, 64
  %v400 = vpop.permute.xlu0 %399
  %v402 = vmul.f32 %v397, %v400
  %v403 = vmul.f32 %v392, 0.0
  %v404 = vadd.f32 %v402, %v403
  %v405 = vrot.slane %v281, 2
  %v406 = vrot.slane %v283, 2
  %v409 = vadd.f32 %v210, %v405
  %v410 = vadd.f32 %v212, %v406
  %v411 = vpack.c.bf16 %v404, %v404
  %413 = vrot.lane.b32.xlu0 %v411, 64
  %v414 = vpop.permute.xlu0 %413
  %v416 = vsel %vm341, %v414, 0
  %418 = vmatprep.subr.bf16.mxu0 %v326
  %419 = vmatpush1.bf16.msra.mxu0 %v325
  %420 = vmatprep.subr.bf16.mxu0 %v328
  %421 = vmatpush1.bf16.msra.mxu0 %v327
  %422 = vmatprep.subr.bf16.mxu0 %v330
  %423 = vmatpush1.bf16.msra.mxu0 %v329
  %424 = vmatprep.subr.bf16.mxu0 %v332
  %425 = vmatpush1.bf16.msra.mxu0 %v331
  %426 = vmatprep.subr.bf16.mxu0 0
  %427 = vmatpush1.bf16.msra.mxu0 0
  %428 = vmatprep.subr.bf16.mxu0 0
  %429 = vmatpush1.bf16.msra.mxu0 0
  %430 = vmatprep.subr.bf16.mxu0 0
  %431 = vmatpush1.bf16.msra.mxu0 0
  %432 = vmatprep.subr.bf16.mxu0 0
  %433 = vmatpush1.bf16.msra.mxu0 0
  %434 = vmatprep.subr.bf16.mxu0 0
  %435 = vmatpush1.bf16.msra.mxu0 0
  %436 = vmatprep.subr.bf16.mxu0 0
  %437 = vmatpush1.bf16.msra.mxu0 0
  %438 = vmatprep.subr.bf16.mxu0 0
  %439 = vmatpush1.bf16.msra.mxu0 0
  %440 = vmatprep.subr.bf16.mxu0 0
  %441 = vmatpush1.bf16.msra.mxu0 0
  %442 = vmatprep.subr.bf16.mxu0 0
  %443 = vmatpush1.bf16.msra.mxu0 0
  %444 = vmatprep.subr.bf16.mxu0 0
  %445 = vmatpush1.bf16.msra.mxu0 0
  %446 = vmatprep.subr.bf16.mxu0 0
  %447 = vmatpush1.bf16.msra.mxu0 0
  %448 = vmatprep.subr.bf16.mxu0 0
  %449 = vmatpush1.bf16.msra.mxu0 0
  %450 = vmatprep.mubr.bf16.mxu0 0
  %451 = vmatmul.mubr.bf16.gmra.mrb[0].mxu0 %v416
  %v452 = vpop.f32.mrb[0].mxu0
  %v453 = vadd.f32 0.0, %v452
  %v454 = vpop.f32.mrb[0].mxu0
  %v455 = vadd.f32 0.0, %v454
  %v456 = vpop.f32.mrb[0].mxu0
  %v457 = vpop.f32.mrb[0].mxu0
  %458 = vdwg.mxu0
  %v460 = vrot.slane %v453, 6
  %v462 = vadd.f32 %v409, %v460
  %v463 = vxor.u32 %v462, 2147483648
  %v464 = vmul.f32 %v463, 1.442695
  %v465 = vpow.pop %v464
  %v466 = vadd.f32 %v465, 1.0
  %v467 = vrcp.pop %v466
  %v468 = vmul.f32 1.0, %v467
  %v469 = vadd.f32 %v455, %v35
  %v471 = vrot.slane %v469, 6
  %v473 = vmul.f32 %v468, %v471
  %v474 = vadd.f32 %v410, %v473
  %v475 = vtanh.pop %v474
  %v476 = vsub.f32 1.0, %v468
  %478 = vrot.lane.b32.xlu0 %v475, 64
  %v479 = vpop.permute.xlu0 %478
  %v481 = vmul.f32 %v476, %v479
  %v483 = vrot.slane %v404, 6
  %v485 = vmul.f32 %v468, %v483
  %v486 = vadd.f32 %v481, %v485
  %v487 = vpack.c.bf16 %v486, %v486
  %v489 = vrot.slane %v487, 1
  %490 = vrot.lane.b32.xlu0 %v489, 64
  %v491 = vpop.permute.xlu0 %490
  %v493 = vsel %vm341, %v491, 0
  %495 = vmatprep.subr.bf16.mxu0 %v326
  %496 = vmatpush1.bf16.msra.mxu0 %v325
  %497 = vmatprep.subr.bf16.mxu0 %v328
  %498 = vmatpush1.bf16.msra.mxu0 %v327
  %499 = vmatprep.subr.bf16.mxu0 %v330
  %500 = vmatpush1.bf16.msra.mxu0 %v329
  %501 = vmatprep.subr.bf16.mxu0 %v332
  %502 = vmatpush1.bf16.msra.mxu0 %v331
  %503 = vmatprep.subr.bf16.mxu0 0
  %504 = vmatpush1.bf16.msra.mxu0 0
  %505 = vmatprep.subr.bf16.mxu0 0
  %506 = vmatpush1.bf16.msra.mxu0 0
  %507 = vmatprep.subr.bf16.mxu0 0
  %508 = vmatpush1.bf16.msra.mxu0 0
  %509 = vmatprep.subr.bf16.mxu0 0
  %510 = vmatpush1.bf16.msra.mxu0 0
  %511 = vmatprep.subr.bf16.mxu0 0
  %512 = vmatpush1.bf16.msra.mxu0 0
  %513 = vmatprep.subr.bf16.mxu0 0
  %514 = vmatpush1.bf16.msra.mxu0 0
  %515 = vmatprep.subr.bf16.mxu0 0
  %516 = vmatpush1.bf16.msra.mxu0 0
  %517 = vmatprep.subr.bf16.mxu0 0
  %518 = vmatpush1.bf16.msra.mxu0 0
  %519 = vmatprep.subr.bf16.mxu0 0
  %520 = vmatpush1.bf16.msra.mxu0 0
  %521 = vmatprep.subr.bf16.mxu0 0
  %522 = vmatpush1.bf16.msra.mxu0 0
  %523 = vmatprep.subr.bf16.mxu0 0
  %524 = vmatpush1.bf16.msra.mxu0 0
  %525 = vmatprep.subr.bf16.mxu0 0
  %526 = vmatpush1.bf16.msra.mxu0 0
  %527 = vmatprep.mubr.bf16.mxu0 0
  %528 = vmatmul.mubr.bf16.gmra.mrb[0].mxu0 %v493
  %v529 = vpop.f32.mrb[0].mxu0
  %v530 = vadd.f32 0.0, %v529
  %v531 = vpop.f32.mrb[0].mxu0
  %v532 = vadd.f32 0.0, %v531
  %v533 = vpop.f32.mrb[0].mxu0
  %v534 = vpop.f32.mrb[0].mxu0
  %535 = vdwg.mxu0
  %v537 = vrot.slane %v530, 4
  %v539 = vadd.f32 %v299, %v537
  %v540 = vxor.u32 %v539, 2147483648
  %v541 = vmul.f32 %v540, 1.442695
  %v542 = vpow.pop %v541
  %v543 = vadd.f32 %v542, 1.0
  %v544 = vrcp.pop %v543
  %v545 = vmul.f32 1.0, %v544
  %v546 = vadd.f32 %v532, %v35
  %v548 = vrot.slane %v546, 4
  %v550 = vmul.f32 %v545, %v548
  %v551 = vadd.f32 %v300, %v550
  %v552 = vtanh.pop %v551
  %v553 = vsub.f32 1.0, %v545
  %555 = vrot.lane.b32.xlu0 %v552, 64
  %v556 = vpop.permute.xlu0 %555
  %v558 = vmul.f32 %v553, %v556
  %v560 = vrot.slane %v486, 6
  %v562 = vmul.f32 %v545, %v560
  %v563 = vadd.f32 %v558, %v562
  %v564 = vpack.c.bf16 %v563, %v563
  %v566 = vrot.slane %v564, 2
  %567 = vrot.lane.b32.xlu0 %v566, 64
  %v568 = vpop.permute.xlu0 %567
  %v570 = vsel %vm341, %v568, 0
  %572 = vmatprep.subr.bf16.mxu0 %v326
  %573 = vmatpush1.bf16.msra.mxu0 %v325
  %574 = vmatprep.subr.bf16.mxu0 %v328
  %575 = vmatpush1.bf16.msra.mxu0 %v327
  %576 = vmatprep.subr.bf16.mxu0 %v330
  %577 = vmatpush1.bf16.msra.mxu0 %v329
  %578 = vmatprep.subr.bf16.mxu0 %v332
  %579 = vmatpush1.bf16.msra.mxu0 %v331
  %580 = vmatprep.subr.bf16.mxu0 0
  %581 = vmatpush1.bf16.msra.mxu0 0
  %582 = vmatprep.subr.bf16.mxu0 0
  %583 = vmatpush1.bf16.msra.mxu0 0
  %584 = vmatprep.subr.bf16.mxu0 0
  %585 = vmatpush1.bf16.msra.mxu0 0
  %586 = vmatprep.subr.bf16.mxu0 0
  %587 = vmatpush1.bf16.msra.mxu0 0
  %588 = vmatprep.subr.bf16.mxu0 0
  %589 = vmatpush1.bf16.msra.mxu0 0
  %590 = vmatprep.subr.bf16.mxu0 0
  %591 = vmatpush1.bf16.msra.mxu0 0
  %592 = vmatprep.subr.bf16.mxu0 0
  %593 = vmatpush1.bf16.msra.mxu0 0
  %594 = vmatprep.subr.bf16.mxu0 0
  %595 = vmatpush1.bf16.msra.mxu0 0
  %596 = vmatprep.subr.bf16.mxu0 0
  %597 = vmatpush1.bf16.msra.mxu0 0
  %598 = vmatprep.subr.bf16.mxu0 0
  %599 = vmatpush1.bf16.msra.mxu0 0
  %600 = vmatprep.subr.bf16.mxu0 0
  %601 = vmatpush1.bf16.msra.mxu0 0
  %602 = vmatprep.subr.bf16.mxu0 0
  %603 = vmatpush1.bf16.msra.mxu0 0
  %604 = vmatprep.mubr.bf16.mxu0 0
  %605 = vmatmul.mubr.bf16.gmra.mrb[0].mxu0 %v570
  %v606 = vpop.f32.mrb[0].mxu0
  %v607 = vadd.f32 0.0, %v606
  %v608 = vpop.f32.mrb[0].mxu0
  %v609 = vadd.f32 0.0, %v608
  %v610 = vpop.f32.mrb[0].mxu0
  %v611 = vpop.f32.mrb[0].mxu0
  %612 = vdwg.mxu0
  %v614 = vrot.slane %v607, 2
  %v616 = vadd.f32 %v409, %v614
  %v617 = vxor.u32 %v616, 2147483648
  %v618 = vmul.f32 %v617, 1.442695
  %v619 = vpow.pop %v618
  %v620 = vadd.f32 %v619, 1.0
  %v621 = vrcp.pop %v620
  %v622 = vmul.f32 1.0, %v621
  %v623 = vadd.f32 %v609, %v35
  %v625 = vrot.slane %v623, 2
  %v627 = vmul.f32 %v622, %v625
  %v628 = vadd.f32 %v410, %v627
  %v629 = vtanh.pop %v628
  %v630 = vsub.f32 1.0, %v622
  %632 = vrot.lane.b32.xlu0 %v629, 64
  %v633 = vpop.permute.xlu0 %632
  %v635 = vmul.f32 %v630, %v633
  %v637 = vrot.slane %v563, 6
  %v639 = vmul.f32 %v622, %v637
  %v640 = vadd.f32 %v635, %v639
  %v643 = vrot.slane %v277, 6
  %v644 = vrot.slane %v279, 6
  %v647 = vadd.f32 %v214, %v643
  %v648 = vadd.f32 %v216, %v644
  %v649 = vpack.c.bf16 %v640, %v640
  %v651 = vrot.slane %v649, 3
  %652 = vrot.lane.b32.xlu0 %v651, 64
  %v653 = vpop.permute.xlu0 %652
  %v655 = vsel %vm341, %v653, 0
  %657 = vmatprep.subr.bf16.mxu0 %v326
  %658 = vmatpush1.bf16.msra.mxu0 %v325
  %659 = vmatprep.subr.bf16.mxu0 %v328
  %660 = vmatpush1.bf16.msra.mxu0 %v327
  %661 = vmatprep.subr.bf16.mxu0 %v330
  %662 = vmatpush1.bf16.msra.mxu0 %v329
  %663 = vmatprep.subr.bf16.mxu0 %v332
  %664 = vmatpush1.bf16.msra.mxu0 %v331
  %665 = vmatprep.subr.bf16.mxu0 0
  %666 = vmatpush1.bf16.msra.mxu0 0
  %667 = vmatprep.subr.bf16.mxu0 0
  %668 = vmatpush1.bf16.msra.mxu0 0
  %669 = vmatprep.subr.bf16.mxu0 0
  %670 = vmatpush1.bf16.msra.mxu0 0
  %671 = vmatprep.subr.bf16.mxu0 0
  %672 = vmatpush1.bf16.msra.mxu0 0
  %673 = vmatprep.subr.bf16.mxu0 0
  %674 = vmatpush1.bf16.msra.mxu0 0
  %675 = vmatprep.subr.bf16.mxu0 0
  %676 = vmatpush1.bf16.msra.mxu0 0
  %677 = vmatprep.subr.bf16.mxu0 0
  %678 = vmatpush1.bf16.msra.mxu0 0
  %679 = vmatprep.subr.bf16.mxu0 0
  %680 = vmatpush1.bf16.msra.mxu0 0
  %681 = vmatprep.subr.bf16.mxu0 0
  %682 = vmatpush1.bf16.msra.mxu0 0
  %683 = vmatprep.subr.bf16.mxu0 0
  %684 = vmatpush1.bf16.msra.mxu0 0
  %685 = vmatprep.subr.bf16.mxu0 0
  %686 = vmatpush1.bf16.msra.mxu0 0
  %687 = vmatprep.subr.bf16.mxu0 0
  %688 = vmatpush1.bf16.msra.mxu0 0
  %689 = vmatprep.mubr.bf16.mxu0 0
  %690 = vmatmul.mubr.bf16.gmra.mrb[0].mxu0 %v655
  %v691 = vpop.f32.mrb[0].mxu0
  %v692 = vadd.f32 0.0, %v691
  %v693 = vpop.f32.mrb[0].mxu0
  %v694 = vadd.f32 0.0, %v693
  %v695 = vpop.f32.mrb[0].mxu0
  %v696 = vpop.f32.mrb[0].mxu0
  %697 = vdwg.mxu0
  %v698 = vadd.f32 %v647, %v692
  %v699 = vxor.u32 %v698, 2147483648
  %v700 = vmul.f32 %v699, 1.442695
  %v701 = vpow.pop %v700
  %v702 = vadd.f32 %v701, 1.0
  %v703 = vrcp.pop %v702
  %v704 = vmul.f32 1.0, %v703
  %v705 = vadd.f32 %v694, %v35
  %v706 = vmul.f32 %v704, %v705
  %v707 = vadd.f32 %v648, %v706
  %v708 = vtanh.pop %v707
  %v709 = vsub.f32 1.0, %v704
  %711 = vrot.lane.b32.xlu0 %v708, 64
  %v712 = vpop.permute.xlu0 %711
  %v714 = vmul.f32 %v709, %v712
  %v716 = vrot.slane %v640, 6
  %v718 = vmul.f32 %v704, %v716
  %v719 = vadd.f32 %v714, %v718
  %v720 = vrot.slane %v277, 2
  %v721 = vrot.slane %v279, 2
  %v724 = vadd.f32 %v214, %v720
  %v725 = vadd.f32 %v216, %v721
  %v726 = vpack.c.bf16 %v719, %v719
  %728 = vrot.lane.b32.xlu0 %v726, 64
  %v729 = vpop.permute.xlu0 %728
  %v731 = vsel %vm341, %v729, 0
  %733 = vmatprep.subr.bf16.mxu0 %v326
  %734 = vmatpush1.bf16.msra.mxu0 %v325
  %735 = vmatprep.subr.bf16.mxu0 %v328
  %736 = vmatpush1.bf16.msra.mxu0 %v327
  %737 = vmatprep.subr.bf16.mxu0 %v330
  %738 = vmatpush1.bf16.msra.mxu0 %v329
  %739 = vmatprep.subr.bf16.mxu0 %v332
  %740 = vmatpush1.bf16.msra.mxu0 %v331
  %741 = vmatprep.subr.bf16.mxu0 0
  %742 = vmatpush1.bf16.msra.mxu0 0
  %743 = vmatprep.subr.bf16.mxu0 0
  %744 = vmatpush1.bf16.msra.mxu0 0
  %745 = vmatprep.subr.bf16.mxu0 0
  %746 = vmatpush1.bf16.msra.mxu0 0
  %747 = vmatprep.subr.bf16.mxu0 0
  %748 = vmatpush1.bf16.msra.mxu0 0
  %749 = vmatprep.subr.bf16.mxu0 0
  %750 = vmatpush1.bf16.msra.mxu0 0
  %751 = vmatprep.subr.bf16.mxu0 0
  %752 = vmatpush1.bf16.msra.mxu0 0
  %753 = vmatprep.subr.bf16.mxu0 0
  %754 = vmatpush1.bf16.msra.mxu0 0
  %755 = vmatprep.subr.bf16.mxu0 0
  %756 = vmatpush1.bf16.msra.mxu0 0
  %757 = vmatprep.subr.bf16.mxu0 0
  %758 = vmatpush1.bf16.msra.mxu0 0
  %759 = vmatprep.subr.bf16.mxu0 0
  %760 = vmatpush1.bf16.msra.mxu0 0
  %761 = vmatprep.subr.bf16.mxu0 0
  %762 = vmatpush1.bf16.msra.mxu0 0
  %763 = vmatprep.subr.bf16.mxu0 0
  %764 = vmatpush1.bf16.msra.mxu0 0
  %765 = vmatprep.mubr.bf16.mxu0 0
  %766 = vmatmul.mubr.bf16.gmra.mrb[0].mxu0 %v731
  %v767 = vpop.f32.mrb[0].mxu0
  %v768 = vadd.f32 0.0, %v767
  %v769 = vpop.f32.mrb[0].mxu0
  %v770 = vadd.f32 0.0, %v769
  %v771 = vpop.f32.mrb[0].mxu0
  %v772 = vpop.f32.mrb[0].mxu0
  %773 = vdwg.mxu0
  %v775 = vrot.slane %v768, 6
  %v777 = vadd.f32 %v724, %v775
  %v778 = vxor.u32 %v777, 2147483648
  %v779 = vmul.f32 %v778, 1.442695
  %v780 = vpow.pop %v779
  %v781 = vadd.f32 %v780, 1.0
  %v782 = vrcp.pop %v781
  %v783 = vmul.f32 1.0, %v782
  %v784 = vadd.f32 %v770, %v35
  %v786 = vrot.slane %v784, 6
  %v788 = vmul.f32 %v783, %v786
  %v789 = vadd.f32 %v725, %v788
  %v790 = vtanh.pop %v789
  %v791 = vsub.f32 1.0, %v783
  %793 = vrot.lane.b32.xlu0 %v790, 64
  %v794 = vpop.permute.xlu0 %793
  %v796 = vmul.f32 %v791, %v794
  %v798 = vrot.slane %v719, 6
  %v800 = vmul.f32 %v783, %v798
  %v801 = vadd.f32 %v796, %v800
  %v802 = vpack.c.bf16 %v801, %v801
  %v804 = vrot.slane %v802, 1
  %805 = vrot.lane.b32.xlu0 %v804, 64
  %v806 = vpop.permute.xlu0 %805
  %v808 = vsel %vm341, %v806, 0
  %810 = vmatprep.subr.bf16.mxu0 %v326
  %811 = vmatpush1.bf16.msra.mxu0 %v325
  %812 = vmatprep.subr.bf16.mxu0 %v328
  %813 = vmatpush1.bf16.msra.mxu0 %v327
  %814 = vmatprep.subr.bf16.mxu0 %v330
  %815 = vmatpush1.bf16.msra.mxu0 %v329
  %816 = vmatprep.subr.bf16.mxu0 %v332
  %817 = vmatpush1.bf16.msra.mxu0 %v331
  %818 = vmatprep.subr.bf16.mxu0 0
  %819 = vmatpush1.bf16.msra.mxu0 0
  %820 = vmatprep.subr.bf16.mxu0 0
  %821 = vmatpush1.bf16.msra.mxu0 0
  %822 = vmatprep.subr.bf16.mxu0 0
  %823 = vmatpush1.bf16.msra.mxu0 0
  %824 = vmatprep.subr.bf16.mxu0 0
  %825 = vmatpush1.bf16.msra.mxu0 0
  %826 = vmatprep.subr.bf16.mxu0 0
  %827 = vmatpush1.bf16.msra.mxu0 0
  %828 = vmatprep.subr.bf16.mxu0 0
  %829 = vmatpush1.bf16.msra.mxu0 0
  %830 = vmatprep.subr.bf16.mxu0 0
  %831 = vmatpush1.bf16.msra.mxu0 0
  %832 = vmatprep.subr.bf16.mxu0 0
  %833 = vmatpush1.bf16.msra.mxu0 0
  %834 = vmatprep.subr.bf16.mxu0 0
  %835 = vmatpush1.bf16.msra.mxu0 0
  %836 = vmatprep.subr.bf16.mxu0 0
  %837 = vmatpush1.bf16.msra.mxu0 0
  %838 = vmatprep.subr.bf16.mxu0 0
  %839 = vmatpush1.bf16.msra.mxu0 0
  %840 = vmatprep.subr.bf16.mxu0 0
  %841 = vmatpush1.bf16.msra.mxu0 0
  %842 = vmatprep.mubr.bf16.mxu0 0
  %843 = vmatmul.mubr.bf16.gmra.mrb[0].mxu0 %v808
  %v844 = vpop.f32.mrb[0].mxu0
  %v845 = vadd.f32 0.0, %v844
  %v846 = vpop.f32.mrb[0].mxu0
  %v847 = vadd.f32 0.0, %v846
  %v848 = vpop.f32.mrb[0].mxu0
  %v849 = vpop.f32.mrb[0].mxu0
  %850 = vdwg.mxu0
  %v852 = vrot.slane %v845, 4
  %v854 = vadd.f32 %v647, %v852
  %v855 = vxor.u32 %v854, 2147483648
  %v856 = vmul.f32 %v855, 1.442695
  %v857 = vpow.pop %v856
  %v858 = vadd.f32 %v857, 1.0
  %v859 = vrcp.pop %v858
  %v860 = vmul.f32 1.0, %v859
  %v861 = vadd.f32 %v847, %v35
  %v863 = vrot.slane %v861, 4
  %v865 = vmul.f32 %v860, %v863
  %v866 = vadd.f32 %v648, %v865
  %v867 = vtanh.pop %v866
  %v868 = vsub.f32 1.0, %v860
  %870 = vrot.lane.b32.xlu0 %v867, 64
  %v871 = vpop.permute.xlu0 %870
  %v873 = vmul.f32 %v868, %v871
  %v875 = vrot.slane %v801, 6
  %v877 = vmul.f32 %v860, %v875
  %v878 = vadd.f32 %v873, %v877
  %v879 = vpack.c.bf16 %v878, %v878
  %v881 = vrot.slane %v879, 2
  %882 = vrot.lane.b32.xlu0 %v881, 64
  %v883 = vpop.permute.xlu0 %882
  %v885 = vsel %vm341, %v883, 0
  %887 = vmatprep.subr.bf16.mxu0 %v326
  %888 = vmatpush1.bf16.msra.mxu0 %v325
  %889 = vmatprep.subr.bf16.mxu0 %v328
  %890 = vmatpush1.bf16.msra.mxu0 %v327
  %891 = vmatprep.subr.bf16.mxu0 %v330
  %892 = vmatpush1.bf16.msra.mxu0 %v329
  %893 = vmatprep.subr.bf16.mxu0 %v332
  %894 = vmatpush1.bf16.msra.mxu0 %v331
  %895 = vmatprep.subr.bf16.mxu0 0
  %896 = vmatpush1.bf16.msra.mxu0 0
  %897 = vmatprep.subr.bf16.mxu0 0
  %898 = vmatpush1.bf16.msra.mxu0 0
  %899 = vmatprep.subr.bf16.mxu0 0
  %900 = vmatpush1.bf16.msra.mxu0 0
  %901 = vmatprep.subr.bf16.mxu0 0
  %902 = vmatpush1.bf16.msra.mxu0 0
  %903 = vmatprep.subr.bf16.mxu0 0
  %904 = vmatpush1.bf16.msra.mxu0 0
  %905 = vmatprep.subr.bf16.mxu0 0
  %906 = vmatpush1.bf16.msra.mxu0 0
  %907 = vmatprep.subr.bf16.mxu0 0
  %908 = vmatpush1.bf16.msra.mxu0 0
  %909 = vmatprep.subr.bf16.mxu0 0
  %910 = vmatpush1.bf16.msra.mxu0 0
  %911 = vmatprep.subr.bf16.mxu0 0
  %912 = vmatpush1.bf16.msra.mxu0 0
  %913 = vmatprep.subr.bf16.mxu0 0
  %914 = vmatpush1.bf16.msra.mxu0 0
  %915 = vmatprep.subr.bf16.mxu0 0
  %916 = vmatpush1.bf16.msra.mxu0 0
  %917 = vmatprep.subr.bf16.mxu0 0
  %918 = vmatpush1.bf16.msra.mxu0 0
  %919 = vmatprep.mubr.bf16.mxu0 0
  %920 = vmatmul.mubr.bf16.gmra.mrb[0].mxu0 %v885
  %v921 = vpop.f32.mrb[0].mxu0
  %v922 = vadd.f32 0.0, %v921
  %v923 = vpop.f32.mrb[0].mxu0
  %v924 = vadd.f32 0.0, %v923
  %v925 = vpop.f32.mrb[0].mxu0
  %v926 = vpop.f32.mrb[0].mxu0
  %927 = vdwg.mxu0
  %v929 = vrot.slane %v922, 2
  %v931 = vadd.f32 %v724, %v929
  %v932 = vxor.u32 %v931, 2147483648
  %v933 = vmul.f32 %v932, 1.442695
  %v934 = vpow.pop %v933
  %v935 = vadd.f32 %v934, 1.0
  %v936 = vrcp.pop %v935
  %v937 = vmul.f32 1.0, %v936
  %v938 = vadd.f32 %v924, %v35
  %v940 = vrot.slane %v938, 2
  %v942 = vmul.f32 %v937, %v940
  %v943 = vadd.f32 %v725, %v942
  %v944 = vtanh.pop %v943
  %v945 = vsub.f32 1.0, %v937
  %947 = vrot.lane.b32.xlu0 %v944, 64
  %v948 = vpop.permute.xlu0 %947
  %v950 = vmul.f32 %v945, %v948
  %v952 = vrot.slane %v878, 6
  %v954 = vmul.f32 %v937, %v952
  %v955 = vadd.f32 %v950, %v954
  %vm956 = vcmask 1041408
  %v957 = vsel %vm956, %v404, %v486
  %vm958 = vcmask 1043456
  %v959 = vsel %vm958, %v957, %v563
  %vm960 = vcmask 1045504
  %v961 = vsel %vm960, %v959, %v640
  %v962 = vsel %vm956, %v719, %v801
  %v963 = vsel %vm958, %v962, %v878
  %v964 = vsel %vm960, %v963, %v955
  %v966 = vrot.slane %v955, 6
  %v968 = vrot.slane %v878, 2
  %v970 = vrot.slane %v719, 2
  %v972 = vrot.slane %v563, 2
  %v974 = vrot.slane %v404, 2
  %v976 = vsel %vm956, %v966, %v968
  %v977 = vsel %vm958, %v976, %v875
  %v978 = vsel %vm960, %v977, %v970
  %v979 = vsel %vm956, %v716, %v972
  %v980 = vsel %vm958, %v979, %v560
  %v981 = vsel %vm960, %v980, %v974
  %984 = vrot.lane.b32.xlu0 %v961, 64
  %v985 = vpop.permute.xlu0 %984
  %986 = vrot.lane.b32.xlu0 %v964, 64
  %v987 = vpop.permute.xlu0 %986
  %992 = vrot.lane.b32.xlu0 %v978, 64
  %v993 = vpop.permute.xlu0 %992
  %994 = vrot.lane.b32.xlu0 %v981, 64
  %v995 = vpop.permute.xlu0 %994
  %v998 = vsel %vm102, %v985, %v993
  %v999 = vsel %vm102, %v987, %v995
  %v1000 = vpack.c.bf16 %v999, %v998
  %v1001 = vld [vmem:[%s4] sm:$0xf]
  %v1002 = vld [vmem:[%s4 + $0x4] sm:$0xf]
  %v1003 = vld [vmem:[%s4 + $0x8] sm:$0xf]
  %v1004 = vld [vmem:[%s4 + $0xc] sm:$0xf]
  %v1005 = vld [vmem:[%s4 + $0x10] sm:$0xf]
  %v1006 = vld [vmem:[%s4 + $0x14] sm:$0xf]
  %v1007 = vld [vmem:[%s4 + $0x18] sm:$0xf]
  %v1008 = vld [vmem:[%s4 + $0x1c] sm:$0xf]
  %v1017 = vunpack.c.l.b16 %v1001
  %v1018 = vunpack.c.l.b16 %v1002
  %v1019 = vunpack.c.l.b16 %v1003
  %v1020 = vunpack.c.l.b16 %v1004
  %v1021 = vunpack.c.l.b16 %v1005
  %v1022 = vunpack.c.l.b16 %v1006
  %v1023 = vunpack.c.l.b16 %v1007
  %v1024 = vunpack.c.l.b16 %v1008
  %v1025 = vpack.c.b16 %v1018, %v1017
  %v1026 = vpack.c.b16 %v1020, %v1019
  %v1027 = vpack.c.b16 %v1022, %v1021
  %v1028 = vpack.c.b16 %v1024, %v1023
  %v1034 = vsel %vm341, %v1000, 0
  %1036 = vmatprep.subr.bf16.mxu0 0
  %1037 = vmatpush1.bf16.msra.mxu0 %v1025
  %1038 = vmatprep.subr.bf16.mxu0 0
  %1039 = vmatpush1.bf16.msra.mxu0 %v1026
  %1040 = vmatprep.subr.bf16.mxu0 0
  %1041 = vmatpush1.bf16.msra.mxu0 %v1027
  %1042 = vmatprep.subr.bf16.mxu0 0
  %1043 = vmatpush1.bf16.msra.mxu0 %v1028
  %1044 = vmatprep.subr.bf16.mxu0 0
  %1045 = vmatpush1.bf16.msra.mxu0 0
  %1046 = vmatprep.subr.bf16.mxu0 0
  %1047 = vmatpush1.bf16.msra.mxu0 0
  %1048 = vmatprep.subr.bf16.mxu0 0
  %1049 = vmatpush1.bf16.msra.mxu0 0
  %1050 = vmatprep.subr.bf16.mxu0 0
  %1051 = vmatpush1.bf16.msra.mxu0 0
  %1052 = vmatprep.subr.bf16.mxu0 0
  %1053 = vmatpush1.bf16.msra.mxu0 0
  %1054 = vmatprep.subr.bf16.mxu0 0
  %1055 = vmatpush1.bf16.msra.mxu0 0
  %1056 = vmatprep.subr.bf16.mxu0 0
  %1057 = vmatpush1.bf16.msra.mxu0 0
  %1058 = vmatprep.subr.bf16.mxu0 0
  %1059 = vmatpush1.bf16.msra.mxu0 0
  %1060 = vmatprep.subr.bf16.mxu0 0
  %1061 = vmatpush1.bf16.msra.mxu0 0
  %1062 = vmatprep.subr.bf16.mxu0 0
  %1063 = vmatpush1.bf16.msra.mxu0 0
  %1064 = vmatprep.subr.bf16.mxu0 0
  %1065 = vmatpush1.bf16.msra.mxu0 0
  %1066 = vmatprep.subr.bf16.mxu0 0
  %1067 = vmatpush1.bf16.msra.mxu0 0
  %1068 = vmatprep.mubr.bf16.mxu0 0
  %1069 = vmatmul.mubr.bf16.gmra.mrb[0].mxu0 %v1034
  %v1070 = vpop.f32.mrb[0].mxu0
  %v1071 = vadd.f32 %v36, %v1070
  %v1072 = vpop.f32.mrb[0].mxu0
  %v1073 = vpop.f32.mrb[0].mxu0
  %v1074 = vadd.f32 %v36, %v1073
  %v1075 = vpop.f32.mrb[0].mxu0
  %1076 = vdwg.mxu0
  %1077 = vadd.xlane.f32.xlu0 %v1071
  %v1078 = vpop.xlane.xlu0 %1077
  %1079 = vadd.xlane.f32.xlu0 %v1074
  %v1080 = vpop.xlane.xlu0 %1079
  %v1081 = vrcp.pop 128.0
  %v1082 = vmul.f32 %v1078, %v1081
  %v1083 = vmul.f32 %v1080, %v1081
  %v1084 = vsub.f32 %v1071, %v1082
  %v1085 = vsub.f32 %v1074, %v1083
  %v1086 = vmul.f32 %v1084, %v1084
  %v1087 = vmul.f32 %v1085, %v1085
  %1088 = vadd.xlane.f32.xlu0 %v1086
  %v1089 = vpop.xlane.xlu0 %1088
  %1090 = vadd.xlane.f32.xlu0 %v1087
  %v1091 = vpop.xlane.xlu0 %1090
  %v1092 = vmul.f32 %v1089, %v1081
  %v1093 = vmul.f32 %v1091, %v1081
  %v1094 = vadd.f32 %v1092, 1e-05
  %v1095 = vadd.f32 %v1093, 1e-05
  %v1096 = vrsqrt.pop %v1094
  %v1097 = vrsqrt.pop %v1095
  %v1098 = vmul.f32 %v1084, %v1096
  %v1099 = vmul.f32 %v1085, %v1097
  %v1100 = vmul.f32 %v1098, %v37
  %v1101 = vmul.f32 %v1099, %v37
  %v1102 = vadd.f32 %v1100, %v38
  %v1103 = vadd.f32 %v1101, %v38
  %v1104 = vmax.f32 %v1102, 0.0
  %v1105 = vmax.f32 %v1103, 0.0
  %v1106 = vpack.c.bf16 %v1105, %v1104
  %v1107 = vld [vmem:[%s5] sm:$0xf]
  %v1108 = vld [vmem:[%s5 + $0x4] sm:$0xf]
  %v1109 = vld [vmem:[%s5 + $0x8] sm:$0xf]
  %v1110 = vld [vmem:[%s5 + $0xc] sm:$0xf]
  %v1111 = vld [vmem:[%s5 + $0x10] sm:$0xf]
  %v1112 = vld [vmem:[%s5 + $0x14] sm:$0xf]
  %v1113 = vld [vmem:[%s5 + $0x18] sm:$0xf]
  %v1114 = vld [vmem:[%s5 + $0x1c] sm:$0xf]
  %v1115 = vld [vmem:[%s5 + $0x20] sm:$0xf]
  %v1116 = vld [vmem:[%s5 + $0x24] sm:$0xf]
  %v1117 = vld [vmem:[%s5 + $0x28] sm:$0xf]
  %v1118 = vld [vmem:[%s5 + $0x2c] sm:$0xf]
  %v1119 = vld [vmem:[%s5 + $0x30] sm:$0xf]
  %v1120 = vld [vmem:[%s5 + $0x34] sm:$0xf]
  %v1121 = vld [vmem:[%s5 + $0x38] sm:$0xf]
  %v1122 = vld [vmem:[%s5 + $0x3c] sm:$0xf]
  %v1139 = vunpack.c.l.b16 %v1107
  %v1140 = vunpack.c.l.b16 %v1108
  %v1141 = vunpack.c.l.b16 %v1109
  %v1142 = vunpack.c.l.b16 %v1110
  %v1143 = vunpack.c.l.b16 %v1111
  %v1144 = vunpack.c.l.b16 %v1112
  %v1145 = vunpack.c.l.b16 %v1113
  %v1146 = vunpack.c.l.b16 %v1114
  %v1147 = vunpack.c.l.b16 %v1115
  %v1148 = vunpack.c.l.b16 %v1116
  %v1149 = vunpack.c.l.b16 %v1117
  %v1150 = vunpack.c.l.b16 %v1118
  %v1151 = vunpack.c.l.b16 %v1119
  %v1152 = vunpack.c.l.b16 %v1120
  %v1153 = vunpack.c.l.b16 %v1121
  %v1154 = vunpack.c.l.b16 %v1122
  %v1155 = vpack.c.b16 %v1140, %v1139
  %v1156 = vpack.c.b16 %v1142, %v1141
  %v1157 = vpack.c.b16 %v1144, %v1143
  %v1158 = vpack.c.b16 %v1146, %v1145
  %v1159 = vpack.c.b16 %v1148, %v1147
  %v1160 = vpack.c.b16 %v1150, %v1149
  %v1161 = vpack.c.b16 %v1152, %v1151
  %v1162 = vpack.c.b16 %v1154, %v1153
  %1171 = vmatprep.subr.bf16.mxu0 0
  %1172 = vmatpush1.bf16.msra.mxu0 %v1155
  %1173 = vmatprep.subr.bf16.mxu0 0
  %1174 = vmatpush1.bf16.msra.mxu0 %v1156
  %1175 = vmatprep.subr.bf16.mxu0 0
  %1176 = vmatpush1.bf16.msra.mxu0 %v1157
  %1177 = vmatprep.subr.bf16.mxu0 0
  %1178 = vmatpush1.bf16.msra.mxu0 %v1158
  %1179 = vmatprep.subr.bf16.mxu0 0
  %1180 = vmatpush1.bf16.msra.mxu0 %v1159
  %1181 = vmatprep.subr.bf16.mxu0 0
  %1182 = vmatpush1.bf16.msra.mxu0 %v1160
  %1183 = vmatprep.subr.bf16.mxu0 0
  %1184 = vmatpush1.bf16.msra.mxu0 %v1161
  %1185 = vmatprep.subr.bf16.mxu0 0
  %1186 = vmatpush1.bf16.msra.mxu0 %v1162
  %1187 = vmatprep.subr.bf16.mxu0 0
  %1188 = vmatpush1.bf16.msra.mxu0 0
  %1189 = vmatprep.subr.bf16.mxu0 0
  %1190 = vmatpush1.bf16.msra.mxu0 0
  %1191 = vmatprep.subr.bf16.mxu0 0
  %1192 = vmatpush1.bf16.msra.mxu0 0
  %1193 = vmatprep.subr.bf16.mxu0 0
  %1194 = vmatpush1.bf16.msra.mxu0 0
  %1195 = vmatprep.subr.bf16.mxu0 0
  %1196 = vmatpush1.bf16.msra.mxu0 0
  %1197 = vmatprep.subr.bf16.mxu0 0
  %1198 = vmatpush1.bf16.msra.mxu0 0
  %1199 = vmatprep.subr.bf16.mxu0 0
  %1200 = vmatpush1.bf16.msra.mxu0 0
  %1201 = vmatprep.subr.bf16.mxu0 0
  %1202 = vmatpush1.bf16.msra.mxu0 0
  %1203 = vmatprep.mubr.bf16.mxu0 0
  %1204 = vmatmul.mubr.bf16.gmra.mrb[0].mxu0 %v1106
  %v1205 = vpop.f32.mrb[0].mxu0
  %v1206 = vadd.f32 %v39, %v1205
  %v1207 = vpop.f32.mrb[0].mxu0
  %v1208 = vpop.f32.mrb[0].mxu0
  %v1209 = vadd.f32 %v39, %v1208
  %v1210 = vpop.f32.mrb[0].mxu0
  %1211 = vdwg.mxu0
  %v1212 = vsel %vm102, %v1206, 0.0
  %1213 = vadd.xlane.f32.xlu0 %v1212
  %v1214 = vpop.xlane.xlu0 %1213
  %v1215 = vsel %vm102, %v1209, 0.0
  %1216 = vadd.xlane.f32.xlu0 %v1215
  %v1217 = vpop.xlane.xlu0 %1216
  %v1218 = vmul.f32 %v1214, %v109
  %v1219 = vmul.f32 %v1217, %v109
  %v1220 = vsub.f32 %v1206, %v1218
  %v1221 = vsub.f32 %v1209, %v1219
  %v1222 = vmul.f32 %v1220, %v1220
  %v1223 = vmul.f32 %v1221, %v1221
  %v1224 = vsel %vm102, %v1222, 0.0
  %1225 = vadd.xlane.f32.xlu0 %v1224
  %v1226 = vpop.xlane.xlu0 %1225
  %v1227 = vsel %vm102, %v1223, 0.0
  %1228 = vadd.xlane.f32.xlu0 %v1227
  %v1229 = vpop.xlane.xlu0 %1228
  %v1230 = vmul.f32 %v1226, %v109
  %v1231 = vmul.f32 %v1229, %v109
  %v1232 = vadd.f32 %v1230, 1e-05
  %v1233 = vadd.f32 %v1231, 1e-05
  %v1234 = vrsqrt.pop %v1232
  %v1235 = vrsqrt.pop %v1233
  %v1236 = vmul.f32 %v1220, %v1234
  %v1237 = vmul.f32 %v1221, %v1235
  %v1238 = vmul.f32 %v1236, %v40
  %v1239 = vmul.f32 %v1237, %v40
  %v1240 = vadd.f32 %v1238, %v41
  %v1241 = vadd.f32 %v1239, %v41
  %v1242 = vmax.f32 %v1240, 0.0
  %v1243 = vmax.f32 %v1241, 0.0
  %v1244 = vadd.f32 %v1242, %v134
  %v1245 = vadd.f32 %v1243, %v135
  %v1246 = vpack.c.bf16 %v1245, %v1244
  %v1247 = vld [vmem:[%s6] sm:$0xf]
  %v1248 = vld [vmem:[%s6 + $0x4] sm:$0xf]
  %v1249 = vld [vmem:[%s6 + $0x8] sm:$0xf]
  %v1250 = vld [vmem:[%s6 + $0xc] sm:$0xf]
  %v1255 = vunpack.c.l.b16 %v1247
  %v1256 = vunpack.c.l.b16 %v1248
  %v1257 = vunpack.c.l.b16 %v1249
  %v1258 = vunpack.c.l.b16 %v1250
  %v1259 = vpack.c.b16 %v1256, %v1255
  %v1260 = vpack.c.b16 %v1258, %v1257
  %v1264 = vsel %vm102, %v1246, 0
  %1266 = vmatprep.subr.bf16.mxu0 0
  %1267 = vmatpush1.bf16.msra.mxu0 %v1259
  %1268 = vmatprep.subr.bf16.mxu0 0
  %1269 = vmatpush1.bf16.msra.mxu0 %v1260
  %1270 = vmatprep.subr.bf16.mxu0 0
  %1271 = vmatpush1.bf16.msra.mxu0 0
  %1272 = vmatprep.subr.bf16.mxu0 0
  %1273 = vmatpush1.bf16.msra.mxu0 0
  %1274 = vmatprep.subr.bf16.mxu0 0
  %1275 = vmatpush1.bf16.msra.mxu0 0
  %1276 = vmatprep.subr.bf16.mxu0 0
  %1277 = vmatpush1.bf16.msra.mxu0 0
  %1278 = vmatprep.subr.bf16.mxu0 0
  %1279 = vmatpush1.bf16.msra.mxu0 0
  %1280 = vmatprep.subr.bf16.mxu0 0
  %1281 = vmatpush1.bf16.msra.mxu0 0
  %1282 = vmatprep.subr.bf16.mxu0 0
  %1283 = vmatpush1.bf16.msra.mxu0 0
  %1284 = vmatprep.subr.bf16.mxu0 0
  %1285 = vmatpush1.bf16.msra.mxu0 0
  %1286 = vmatprep.subr.bf16.mxu0 0
  %1287 = vmatpush1.bf16.msra.mxu0 0
  %1288 = vmatprep.subr.bf16.mxu0 0
  %1289 = vmatpush1.bf16.msra.mxu0 0
  %1290 = vmatprep.subr.bf16.mxu0 0
  %1291 = vmatpush1.bf16.msra.mxu0 0
  %1292 = vmatprep.subr.bf16.mxu0 0
  %1293 = vmatpush1.bf16.msra.mxu0 0
  %1294 = vmatprep.subr.bf16.mxu0 0
  %1295 = vmatpush1.bf16.msra.mxu0 0
  %1296 = vmatprep.subr.bf16.mxu0 0
  %1297 = vmatpush1.bf16.msra.mxu0 0
  %1298 = vmatprep.mubr.bf16.mxu0 0
  %1299 = vmatmul.mubr.bf16.gmra.mrb[0].mxu0 %v1264
  %v1300 = vpop.f32.mrb[0].mxu0
  %v1301 = vadd.f32 %v42, %v1300
  %v1302 = vpop.f32.mrb[0].mxu0
  %v1303 = vpop.f32.mrb[0].mxu0
  %v1304 = vadd.f32 %v42, %v1303
  %v1305 = vpop.f32.mrb[0].mxu0
  %1306 = vdwg.mxu0
  %1307 = vst [vmem:[%s8] sm:$0xff] %v1301
  %1308 = vst [vmem:[%s8 + $0x8] sm:$0xff] %v1304
  // Predicated region
  $region34: #{multibirnn_forward.1} parent=0 // pred_check
    _
  $region35: #{multibirnn_forward.1} parent=0 // pred_check_branch
    %1310 = sbr.rel (0) target = $region37
  $region36: #{multibirnn_forward.1} parent=0 // pred_region
    _
  $region37: #{multibirnn_forward.1} parent=0 // pred_fallthru
    _
  // Predicated region
  $region38: #{multibirnn_forward.1} parent=0 // pred_check
    _
  $region39: #{multibirnn_forward.1} parent=0 // pred_check_branch
    %1312 = sbr.rel (0) target = $region41
  $region40: #{multibirnn_forward.1} parent=0 // pred_region
    _
  $region41: #{multibirnn_forward.1} parent=0 // pred_fallthru
    _

</llo_original>
